<compile_context>
chip_gen: v5e
topology: v5e:2x2
jax: 0.10.0
libtpu: 0.0.40
codegen_flags: <defaults>
</compile_context>

<pallas_src>
import jax
import jax.numpy as jnp
from jax.experimental import pallas as pl
from jax.experimental.pallas import tpu as pltpu


# ----------------------------------------------------------------------------
# Weight preparation (done once, outside the kernel / outside jit):
#   - pre-transposed PyTorch LSTM weights [E,4H]/[H,4H] with gate columns (i,f,g,o)
#   - reorder gate columns to (i,f,o,g) so sigmoid covers a contiguous 3H block
#   - concat fwd|bwd input projections -> [E, 8H]
#   - block-diagonal recurrent weights -> [2H, 8H] so one matmul serves both dirs
# ----------------------------------------------------------------------------
def _reorder_ifgo_to_ifog(w, H):
    # columns (i, f, g, o) -> (i, f, o, g)
    return jnp.concatenate([w[:, :2 * H], w[:, 3 * H:4 * H], w[:, 2 * H:3 * H]], axis=-1)


def prepare_fused_lstm_weights(wih_f_T, whh_f_T, wih_b_T, whh_b_T):
    E, H4 = wih_f_T.shape
    H = H4 // 4
    wih8 = jnp.concatenate([_reorder_ifgo_to_ifog(wih_f_T, H),
                            _reorder_ifgo_to_ifog(wih_b_T, H)], axis=-1)        # [E, 8H]
    zeros = jnp.zeros((H, H4), jnp.float32)
    whh8 = jnp.concatenate([
        jnp.concatenate([_reorder_ifgo_to_ifog(whh_f_T, H), zeros], axis=-1),   # rows 0:H  (h_f)
        jnp.concatenate([zeros, _reorder_ifgo_to_ifog(whh_b_T, H)], axis=-1),   # rows H:2H (h_b)
    ], axis=0)                                                                   # [2H, 8H]
    return wih8, whh8


# ----------------------------------------------------------------------------
# Fused kernel: both sentences' BiLSTMs + target-time gather + MLP head + softmax
#
# PyTorch gate order (i, f, g, o), bias=False; gates reordered to (i, f, o, g).
# Packed-sequence semantics: forward state freezes at t >= length; backward
# recursion effectively starts at t = length-1 (state stays at (h0,c0) before
# that); target-time outputs default to 0 if target >= length (matches zeroed
# padded outputs of pad_packed_sequence).
# ----------------------------------------------------------------------------
def wic_fused_kernel(emb_ref, len_ref, tgt_ref, wih8_ref, whh8_ref,
                     h0_ref, c0_ref, w1_ref, w2_ref, w3_ref,
                     logits_ref, probs_ref):
    B2 = len_ref.shape[0]            # stacked batch: rows 0:B sentence1, B:2B sentence2
    B = B2 // 2
    E = emb_ref.shape[1]
    T = emb_ref.shape[0] // B2
    H = h0_ref.shape[1] // 2
    H3, H4 = 3 * H, 4 * H

    # Hoisted input projection: ONE matmul for the whole sequence, both directions.
    # rows are (t, b) row-major; columns are [fwd (i,f,o,g) | bwd (i,f,o,g)].
    gin = jnp.dot(emb_ref[...], wih8_ref[...],
                  preferred_element_type=jnp.float32)                    # [T*B2, 8H]

    whh8 = whh8_ref[...]                                                 # [2H, 8H]
    lengths = len_ref[...]                                               # [B2, 1] int32
    targets = tgt_ref[...]                                               # [B2, 1] int32

    h0 = h0_ref[...]                                                     # [B2, 2H] = [h_f | h_b]
    c0 = c0_ref[...]
    h_f, h_b = h0[:, :H], h0[:, H:]
    c_f, c_b = c0[:, :H], c0[:, H:]
    te_f = jnp.zeros((B2, H), jnp.float32)                               # target-time fwd hidden
    te_b = jnp.zeros((B2, H), jnp.float32)                               # target-time bwd hidden

    # Fully unrolled time loop (T is small & static) — state stays in vregs.
    for t in range(T):
        tb = T - 1 - t

        # Single recurrent MXU push for both directions (block-diagonal W_hh).
        h_cat = jnp.concatenate([h_f, h_b], axis=-1)                     # [B2, 2H]
        g_rec = jnp.dot(h_cat, whh8, preferred_element_type=jnp.float32)  # [B2, 8H]

        g_f = gin[t * B2:(t + 1) * B2, :H4] + g_rec[:, :H4]
        g_b = gin[tb * B2:(tb + 1) * B2, H4:] + g_rec[:, H4:]

        # gate order (i, f, o, g): one sigmoid over 3H lanes + one tanh per dir.
        s_f = jax.nn.sigmoid(g_f[:, :H3])
        gg_f = jnp.tanh(g_f[:, H3:])
        s_b = jax.nn.sigmoid(g_b[:, :H3])
        gg_b = jnp.tanh(g_b[:, H3:])

        c_f_new = s_f[:, H:2 * H] * c_f + s_f[:, :H] * gg_f
        h_f_new = s_f[:, 2 * H:H3] * jnp.tanh(c_f_new)
        c_b_new = s_b[:, H:2 * H] * c_b + s_b[:, :H] * gg_b
        h_b_new = s_b[:, 2 * H:H3] * jnp.tanh(c_b_new)

        # packed-sequence semantics: freeze state outside the valid length.
        valid_f = t < lengths                                            # [B2, 1] bool
        valid_b = tb < lengths
        h_f = jnp.where(valid_f, h_f_new, h_f)
        c_f = jnp.where(valid_f, c_f_new, c_f)
        h_b = jnp.where(valid_b, h_b_new, h_b)
        c_b = jnp.where(valid_b, c_b_new, c_b)

        # accumulate only the target-time hidden states (no [T,B,H] writeback).
        te_f = jnp.where((targets == t) & valid_f, h_f_new, te_f)
        te_b = jnp.where((targets == tb) & valid_b, h_b_new, te_b)

    # x = concat(te1, te2) with te = [h_fwd | h_bwd] at the target timestep.
    x = jnp.concatenate([te_f[:B], te_b[:B], te_f[B:], te_b[B:]], axis=-1)  # [B, 4H]

    # MLP head: fc1 -> relu -> fc2 -> relu -> fc_out -> softmax (dropout no-op at inference)
    h1v = jnp.maximum(jnp.dot(x, w1_ref[...], preferred_element_type=jnp.float32), 0.0)
    h2v = jnp.maximum(jnp.dot(h1v, w2_ref[...], preferred_element_type=jnp.float32), 0.0)
    logits = jnp.dot(h2v, w3_ref[...], preferred_element_type=jnp.float32)
    logits_ref[...] = logits

    m = jnp.max(logits, axis=-1, keepdims=True)
    e = jnp.exp(logits - m)
    probs_ref[...] = e * pl.reciprocal(jnp.sum(e, axis=-1, keepdims=True), approx=False)


def wic_fused_pallas(emb_tb, lens, tgts, wih8, whh8, h0_cat, c0_cat, w1_T, w2_T, w3_T):
    B2 = lens.shape[0]
    B = B2 // 2
    out_dim = w3_T.shape[1]
    vmem = pl.BlockSpec(memory_space=pltpu.MemorySpace.VMEM)
    logits, probs = pl.pallas_call(
        wic_fused_kernel,
        out_shape=(jax.ShapeDtypeStruct((B, out_dim), jnp.float32),
                   jax.ShapeDtypeStruct((B, out_dim), jnp.float32)),
        in_specs=[vmem] * 10,
        out_specs=(vmem, vmem),
    )(emb_tb, lens, tgts, wih8, whh8, h0_cat, c0_cat, w1_T, w2_T, w3_T)
    return logits, probs


# ----------------------------------------------------------------------------
# Full forward (glue in plain JAX: embedding lookup, batch-stack, transpose)
# ----------------------------------------------------------------------------
def model_a2m1_forward(params, sentences1, sentences2, lengths, targets,
                       h1, c1, h2, c2):
    B, T = sentences1.shape
    emb_mat = params["embedding"]
    E = emb_mat.shape[1]

    # Stack both sentences along batch: rows 0:B = sentence1, B:2B = sentence2.
    sent_all = jnp.concatenate([sentences1, sentences2], axis=0)          # [2B, T]
    emb = jnp.take(emb_mat, sent_all, axis=0)                             # [2B, T, E]
    emb_tb = jnp.transpose(emb, (1, 0, 2)).reshape(T * 2 * B, E)          # (t, b) row-major

    lens_all = jnp.concatenate([lengths[:, 0], lengths[:, 1]], axis=0).astype(jnp.int32)[:, None]
    tgt_all = jnp.concatenate([targets[:, 0], targets[:, 1]], axis=0).astype(jnp.int32)[:, None]

    # initial LSTM states: [B2, 2H] = [h_fwd | h_bwd] per stacked-batch row.
    h0_cat = jnp.concatenate([jnp.concatenate([h1[0], h2[0]], axis=0),
                              jnp.concatenate([h1[1], h2[1]], axis=0)], axis=-1)
    c0_cat = jnp.concatenate([jnp.concatenate([c1[0], c2[0]], axis=0),
                              jnp.concatenate([c1[1], c2[1]], axis=0)], axis=-1)

    return wic_fused_pallas(emb_tb, lens_all, tgt_all,
                            params["wih8"], params["whh8"], h0_cat, c0_cat,
                            params["w1_T"], params["w2_T"], params["w3_T"])


# ----------------------------------------------------------------------------
# Deterministic parameter init (shapes from ModelA2M1.__init__, bias=False)
# ----------------------------------------------------------------------------
def init_params(key, vocab, embed_dim, hidden_dim, output_dim):
    ks = jax.random.split(key, 8)
    H, E = hidden_dim, embed_dim
    k_lstm = 1.0 / jnp.sqrt(H)
    u = lambda k, shape, bound: jax.random.uniform(k, shape, jnp.float32, -bound, bound)

    # pre-transposed LSTM weights: [E,4H] / [H,4H]  (PyTorch stores [4H,E] / [4H,H],
    # gate column order i,f,g,o)
    wih_f_T = u(ks[1], (E, 4 * H), k_lstm)
    whh_f_T = u(ks[2], (H, 4 * H), k_lstm)
    wih_b_T = u(ks[3], (E, 4 * H), k_lstm)
    whh_b_T = u(ks[4], (H, 4 * H), k_lstm)
    wih8, whh8 = prepare_fused_lstm_weights(wih_f_T, whh_f_T, wih_b_T, whh_b_T)

    return {
        "embedding": jax.random.normal(ks[0], (vocab, E), jnp.float32) * 0.1,
        "wih8": wih8,                       # [E, 8H]   fused+reordered input projection
        "whh8": whh8,                       # [2H, 8H]  block-diagonal recurrent weights
        # pre-transposed FC weights
        "w1_T": u(ks[5], (4 * H, H // 2), 1.0 / jnp.sqrt(4 * H)),
        "w2_T": u(ks[6], (H // 2, H // 4), 1.0 / jnp.sqrt(H // 2)),
        "w3_T": u(ks[7], (H // 4, output_dim), 1.0 / jnp.sqrt(H // 4)),
    }


if __name__ == "__main__":
    B, T, E, H, OUT = 2, 8, 32, 32, 2
    VOCAB = 26809

    key = jax.random.PRNGKey(0)
    kp, ks1, ks2, kl, kt, kh1, kc1, kh2, kc2 = jax.random.split(key, 9)

    params = init_params(kp, VOCAB, E, H, OUT)

    sentences1 = jax.random.randint(ks1, (B, T), 0, VOCAB, dtype=jnp.int32)
    sentences2 = jax.random.randint(ks2, (B, T), 0, VOCAB, dtype=jnp.int32)
    lengths = jax.random.randint(kl, (B, 2), 3, T + 1, dtype=jnp.int32)      # valid lengths
    targets = jnp.minimum(jax.random.randint(kt, (B, 2), 0, T, dtype=jnp.int32),
                          lengths - 1)                                       # target < length

    # random initial LSTM states (torch.randn in the reference forward)
    h1 = jax.random.normal(kh1, (2, B, H), jnp.float32)
    c1 = jax.random.normal(kc1, (2, B, H), jnp.float32)
    h2 = jax.random.normal(kh2, (2, B, H), jnp.float32)
    c2 = jax.random.normal(kc2, (2, B, H), jnp.float32)

    logits, probs = jax.jit(model_a2m1_forward)(
        params, sentences1, sentences2, lengths, targets, h1, c1, h2, c2)
    jax.block_until_ready((logits, probs))

    assert logits.shape == (B, OUT) and probs.shape == (B, OUT)
    assert bool(jnp.all(jnp.abs(jnp.sum(probs, axis=-1) - 1.0) < 1e-5))
    print("KERNEL_OK")
</pallas_src>

<mosaic_0001>
module attributes {stable_mosaic.version = 11 : i64} {
  func.func @wic_fused_kernel(%arg0: memref<32x32xf32, #tpu.memory_space<vmem>>, %arg1: memref<4x1xi32, #tpu.memory_space<vmem>>, %arg2: memref<4x1xi32, #tpu.memory_space<vmem>>, %arg3: memref<32x256xf32, #tpu.memory_space<vmem>>, %arg4: memref<64x256xf32, #tpu.memory_space<vmem>>, %arg5: memref<4x64xf32, #tpu.memory_space<vmem>>, %arg6: memref<4x64xf32, #tpu.memory_space<vmem>>, %arg7: memref<128x16xf32, #tpu.memory_space<vmem>>, %arg8: memref<16x8xf32, #tpu.memory_space<vmem>>, %arg9: memref<8x2xf32, #tpu.memory_space<vmem>>, %arg10: memref<2x2xf32, #tpu.memory_space<vmem>>, %arg11: memref<2x2xf32, #tpu.memory_space<vmem>>) attributes {dimension_semantics = [], scalar_prefetch = 0 : i64, scratch_operands = 0 : i64, tpu.core_type = #tpu.core_type<tc>} {
    %c0 = arith.constant 0 : index
    %c0_0 = arith.constant 0 : index
    %0 = vector.load %arg0[%c0, %c0_0] : memref<32x32xf32, #tpu.memory_space<vmem>>, vector<32x32xf32>
    %c0_1 = arith.constant 0 : index
    %c0_2 = arith.constant 0 : index
    %1 = vector.load %arg3[%c0_1, %c0_2] : memref<32x256xf32, #tpu.memory_space<vmem>>, vector<32x256xf32>
    %cst = arith.constant dense<0.000000e+00> : vector<32x256xf32>
    %2 = tpu.matmul %0, %1, %cst {dimension_numbers = #tpu.dot_dimension_numbers<[1], [0], [0], [1], [0, 0, 1, 1], [], []>} : vector<32x32xf32>, vector<32x256xf32>, vector<32x256xf32> -> vector<32x256xf32>
    %c0_3 = arith.constant 0 : index
    %c0_4 = arith.constant 0 : index
    %3 = vector.load %arg4[%c0_3, %c0_4] : memref<64x256xf32, #tpu.memory_space<vmem>>, vector<64x256xf32>
    %c0_5 = arith.constant 0 : index
    %c0_6 = arith.constant 0 : index
    %4 = vector.load %arg1[%c0_5, %c0_6] : memref<4x1xi32, #tpu.memory_space<vmem>>, vector<4x1xi32>
    %c0_7 = arith.constant 0 : index
    %c0_8 = arith.constant 0 : index
    %5 = vector.load %arg2[%c0_7, %c0_8] : memref<4x1xi32, #tpu.memory_space<vmem>>, vector<4x1xi32>
    %c0_9 = arith.constant 0 : index
    %c0_10 = arith.constant 0 : index
    %6 = vector.load %arg5[%c0_9, %c0_10] : memref<4x64xf32, #tpu.memory_space<vmem>>, vector<4x64xf32>
    %c0_11 = arith.constant 0 : index
    %c0_12 = arith.constant 0 : index
    %7 = vector.load %arg6[%c0_11, %c0_12] : memref<4x64xf32, #tpu.memory_space<vmem>>, vector<4x64xf32>
    %8 = vector.extract_strided_slice %6 {offsets = [0, 0], sizes = [4, 32], strides = [1, 1]} : vector<4x64xf32> to vector<4x32xf32>
    %9 = vector.extract_strided_slice %6 {offsets = [0, 32], sizes = [4, 32], strides = [1, 1]} : vector<4x64xf32> to vector<4x32xf32>
    %10 = vector.extract_strided_slice %7 {offsets = [0, 0], sizes = [4, 32], strides = [1, 1]} : vector<4x64xf32> to vector<4x32xf32>
    %11 = vector.extract_strided_slice %7 {offsets = [0, 32], sizes = [4, 32], strides = [1, 1]} : vector<4x64xf32> to vector<4x32xf32>
    %cst_13 = arith.constant 0.000000e+00 : f32
    %12 = vector.broadcast %cst_13 : f32 to vector<4x32xf32>
    %cst_14 = arith.constant 0.000000e+00 : f32
    %13 = vector.broadcast %cst_14 : f32 to vector<4x32xf32>
    %14 = tpu.concatenate %8, %9 in 1 : vector<4x32xf32>, vector<4x32xf32> -> vector<4x64xf32>
    %cst_15 = arith.constant dense<0.000000e+00> : vector<4x256xf32>
    %15 = tpu.matmul %14, %3, %cst_15 {dimension_numbers = #tpu.dot_dimension_numbers<[1], [0], [0], [1], [0, 0, 1, 1], [], []>} : vector<4x64xf32>, vector<64x256xf32>, vector<4x256xf32> -> vector<4x256xf32>
    %16 = vector.extract_strided_slice %2 {offsets = [0, 0], sizes = [4, 128], strides = [1, 1]} : vector<32x256xf32> to vector<4x128xf32>
    %17 = vector.extract_strided_slice %15 {offsets = [0, 0], sizes = [4, 128], strides = [1, 1]} : vector<4x256xf32> to vector<4x128xf32>
    %18 = arith.addf %16, %17 : vector<4x128xf32>
    %19 = vector.extract_strided_slice %2 {offsets = [28, 128], sizes = [4, 128], strides = [1, 1]} : vector<32x256xf32> to vector<4x128xf32>
    %20 = vector.extract_strided_slice %15 {offsets = [0, 128], sizes = [4, 128], strides = [1, 1]} : vector<4x256xf32> to vector<4x128xf32>
    %21 = arith.addf %19, %20 : vector<4x128xf32>
    %22 = vector.extract_strided_slice %18 {offsets = [0, 0], sizes = [4, 96], strides = [1, 1]} : vector<4x128xf32> to vector<4x96xf32>
    %23 = arith.negf %22 : vector<4x96xf32>
    %24 = math.exp %23 : vector<4x96xf32>
    %cst_16 = arith.constant 1.000000e+00 : f32
    %25 = vector.broadcast %cst_16 : f32 to vector<4x96xf32>
    %26 = arith.addf %25, %24 : vector<4x96xf32>
    %27 = arith.divf %25, %26 : vector<4x96xf32>
    %28 = vector.extract_strided_slice %18 {offsets = [0, 96], sizes = [4, 32], strides = [1, 1]} : vector<4x128xf32> to vector<4x32xf32>
    %29 = math.tanh %28 : vector<4x32xf32>
    %30 = vector.extract_strided_slice %21 {offsets = [0, 0], sizes = [4, 96], strides = [1, 1]} : vector<4x128xf32> to vector<4x96xf32>
    %31 = arith.negf %30 : vector<4x96xf32>
    %32 = math.exp %31 : vector<4x96xf32>
    %cst_17 = arith.constant 1.000000e+00 : f32
    %33 = vector.broadcast %cst_17 : f32 to vector<4x96xf32>
    %34 = arith.addf %33, %32 : vector<4x96xf32>
    %35 = arith.divf %33, %34 : vector<4x96xf32>
    %36 = vector.extract_strided_slice %21 {offsets = [0, 96], sizes = [4, 32], strides = [1, 1]} : vector<4x128xf32> to vector<4x32xf32>
    %37 = math.tanh %36 : vector<4x32xf32>
    %38 = vector.extract_strided_slice %27 {offsets = [0, 32], sizes = [4, 32], strides = [1, 1]} : vector<4x96xf32> to vector<4x32xf32>
    %39 = arith.mulf %38, %10 : vector<4x32xf32>
    %40 = vector.extract_strided_slice %27 {offsets = [0, 0], sizes = [4, 32], strides = [1, 1]} : vector<4x96xf32> to vector<4x32xf32>
    %41 = arith.mulf %40, %29 : vector<4x32xf32>
    %42 = arith.addf %39, %41 : vector<4x32xf32>
    %43 = vector.extract_strided_slice %27 {offsets = [0, 64], sizes = [4, 32], strides = [1, 1]} : vector<4x96xf32> to vector<4x32xf32>
    %44 = math.tanh %42 : vector<4x32xf32>
    %45 = arith.mulf %43, %44 : vector<4x32xf32>
    %46 = vector.extract_strided_slice %35 {offsets = [0, 32], sizes = [4, 32], strides = [1, 1]} : vector<4x96xf32> to vector<4x32xf32>
    %47 = arith.mulf %46, %11 : vector<4x32xf32>
    %48 = vector.extract_strided_slice %35 {offsets = [0, 0], sizes = [4, 32], strides = [1, 1]} : vector<4x96xf32> to vector<4x32xf32>
    %49 = arith.mulf %48, %37 : vector<4x32xf32>
    %50 = arith.addf %47, %49 : vector<4x32xf32>
    %51 = vector.extract_strided_slice %35 {offsets = [0, 64], sizes = [4, 32], strides = [1, 1]} : vector<4x96xf32> to vector<4x32xf32>
    %52 = math.tanh %50 : vector<4x32xf32>
    %53 = arith.mulf %51, %52 : vector<4x32xf32>
    %c0_i32 = arith.constant 0 : i32
    %54 = vector.broadcast %c0_i32 : i32 to vector<4x1xi32>
    %55 = arith.cmpi sgt, %4, %54 : vector<4x1xi32>
    %c7_i32 = arith.constant 7 : i32
    %56 = vector.broadcast %c7_i32 : i32 to vector<4x1xi32>
    %57 = arith.cmpi sgt, %4, %56 : vector<4x1xi32>
    %58 = vector.shape_cast %55 : vector<4x1xi1> to vector<4x1xi1>
    %59 = vector.broadcast %58 : vector<4x1xi1> to vector<4x32xi1>
    %60 = arith.select %59, %45, %8 : vector<4x32xi1>, vector<4x32xf32>
    %61 = vector.shape_cast %55 : vector<4x1xi1> to vector<4x1xi1>
    %62 = vector.broadcast %61 : vector<4x1xi1> to vector<4x32xi1>
    %63 = arith.select %62, %42, %10 : vector<4x32xi1>, vector<4x32xf32>
    %64 = vector.shape_cast %57 : vector<4x1xi1> to vector<4x1xi1>
    %65 = vector.broadcast %64 : vector<4x1xi1> to vector<4x32xi1>
    %66 = arith.select %65, %53, %9 : vector<4x32xi1>, vector<4x32xf32>
    %67 = vector.shape_cast %57 : vector<4x1xi1> to vector<4x1xi1>
    %68 = vector.broadcast %67 : vector<4x1xi1> to vector<4x32xi1>
    %69 = arith.select %68, %50, %11 : vector<4x32xi1>, vector<4x32xf32>
    %c0_i32_18 = arith.constant 0 : i32
    %70 = vector.broadcast %c0_i32_18 : i32 to vector<4x1xi32>
    %71 = arith.cmpi eq, %5, %70 : vector<4x1xi32>
    %72 = arith.andi %71, %55 : vector<4x1xi1>
    %73 = vector.shape_cast %72 : vector<4x1xi1> to vector<4x1xi1>
    %74 = vector.broadcast %73 : vector<4x1xi1> to vector<4x32xi1>
    %75 = arith.select %74, %45, %12 : vector<4x32xi1>, vector<4x32xf32>
    %c7_i32_19 = arith.constant 7 : i32
    %76 = vector.broadcast %c7_i32_19 : i32 to vector<4x1xi32>
    %77 = arith.cmpi eq, %5, %76 : vector<4x1xi32>
    %78 = arith.andi %77, %57 : vector<4x1xi1>
    %79 = vector.shape_cast %78 : vector<4x1xi1> to vector<4x1xi1>
    %80 = vector.broadcast %79 : vector<4x1xi1> to vector<4x32xi1>
    %81 = arith.select %80, %53, %13 : vector<4x32xi1>, vector<4x32xf32>
    %82 = tpu.concatenate %60, %66 in 1 : vector<4x32xf32>, vector<4x32xf32> -> vector<4x64xf32>
    %cst_20 = arith.constant dense<0.000000e+00> : vector<4x256xf32>
    %83 = tpu.matmul %82, %3, %cst_20 {dimension_numbers = #tpu.dot_dimension_numbers<[1], [0], [0], [1], [0, 0, 1, 1], [], []>} : vector<4x64xf32>, vector<64x256xf32>, vector<4x256xf32> -> vector<4x256xf32>
    %84 = vector.extract_strided_slice %2 {offsets = [4, 0], sizes = [4, 128], strides = [1, 1]} : vector<32x256xf32> to vector<4x128xf32>
    %85 = vector.extract_strided_slice %83 {offsets = [0, 0], sizes = [4, 128], strides = [1, 1]} : vector<4x256xf32> to vector<4x128xf32>
    %86 = arith.addf %84, %85 : vector<4x128xf32>
    %87 = vector.extract_strided_slice %2 {offsets = [24, 128], sizes = [4, 128], strides = [1, 1]} : vector<32x256xf32> to vector<4x128xf32>
    %88 = vector.extract_strided_slice %83 {offsets = [0, 128], sizes = [4, 128], strides = [1, 1]} : vector<4x256xf32> to vector<4x128xf32>
    %89 = arith.addf %87, %88 : vector<4x128xf32>
    %90 = vector.extract_strided_slice %86 {offsets = [0, 0], sizes = [4, 96], strides = [1, 1]} : vector<4x128xf32> to vector<4x96xf32>
    %91 = arith.negf %90 : vector<4x96xf32>
    %92 = math.exp %91 : vector<4x96xf32>
    %cst_21 = arith.constant 1.000000e+00 : f32
    %93 = vector.broadcast %cst_21 : f32 to vector<4x96xf32>
    %94 = arith.addf %93, %92 : vector<4x96xf32>
    %95 = arith.divf %93, %94 : vector<4x96xf32>
    %96 = vector.extract_strided_slice %86 {offsets = [0, 96], sizes = [4, 32], strides = [1, 1]} : vector<4x128xf32> to vector<4x32xf32>
    %97 = math.tanh %96 : vector<4x32xf32>
    %98 = vector.extract_strided_slice %89 {offsets = [0, 0], sizes = [4, 96], strides = [1, 1]} : vector<4x128xf32> to vector<4x96xf32>
    %99 = arith.negf %98 : vector<4x96xf32>
    %100 = math.exp %99 : vector<4x96xf32>
    %cst_22 = arith.constant 1.000000e+00 : f32
    %101 = vector.broadcast %cst_22 : f32 to vector<4x96xf32>
    %102 = arith.addf %101, %100 : vector<4x96xf32>
    %103 = arith.divf %101, %102 : vector<4x96xf32>
    %104 = vector.extract_strided_slice %89 {offsets = [0, 96], sizes = [4, 32], strides = [1, 1]} : vector<4x128xf32> to vector<4x32xf32>
    %105 = math.tanh %104 : vector<4x32xf32>
    %106 = vector.extract_strided_slice %95 {offsets = [0, 32], sizes = [4, 32], strides = [1, 1]} : vector<4x96xf32> to vector<4x32xf32>
    %107 = arith.mulf %106, %63 : vector<4x32xf32>
    %108 = vector.extract_strided_slice %95 {offsets = [0, 0], sizes = [4, 32], strides = [1, 1]} : vector<4x96xf32> to vector<4x32xf32>
    %109 = arith.mulf %108, %97 : vector<4x32xf32>
    %110 = arith.addf %107, %109 : vector<4x32xf32>
    %111 = vector.extract_strided_slice %95 {offsets = [0, 64], sizes = [4, 32], strides = [1, 1]} : vector<4x96xf32> to vector<4x32xf32>
    %112 = math.tanh %110 : vector<4x32xf32>
    %113 = arith.mulf %111, %112 : vector<4x32xf32>
    %114 = vector.extract_strided_slice %103 {offsets = [0, 32], sizes = [4, 32], strides = [1, 1]} : vector<4x96xf32> to vector<4x32xf32>
    %115 = arith.mulf %114, %69 : vector<4x32xf32>
    %116 = vector.extract_strided_slice %103 {offsets = [0, 0], sizes = [4, 32], strides = [1, 1]} : vector<4x96xf32> to vector<4x32xf32>
    %117 = arith.mulf %116, %105 : vector<4x32xf32>
    %118 = arith.addf %115, %117 : vector<4x32xf32>
    %119 = vector.extract_strided_slice %103 {offsets = [0, 64], sizes = [4, 32], strides = [1, 1]} : vector<4x96xf32> to vector<4x32xf32>
    %120 = math.tanh %118 : vector<4x32xf32>
    %121 = arith.mulf %119, %120 : vector<4x32xf32>
    %c1_i32 = arith.constant 1 : i32
    %122 = vector.broadcast %c1_i32 : i32 to vector<4x1xi32>
    %123 = arith.cmpi sgt, %4, %122 : vector<4x1xi32>
    %c6_i32 = arith.constant 6 : i32
    %124 = vector.broadcast %c6_i32 : i32 to vector<4x1xi32>
    %125 = arith.cmpi sgt, %4, %124 : vector<4x1xi32>
    %126 = vector.shape_cast %123 : vector<4x1xi1> to vector<4x1xi1>
    %127 = vector.broadcast %126 : vector<4x1xi1> to vector<4x32xi1>
    %128 = arith.select %127, %113, %60 : vector<4x32xi1>, vector<4x32xf32>
    %129 = vector.shape_cast %123 : vector<4x1xi1> to vector<4x1xi1>
    %130 = vector.broadcast %129 : vector<4x1xi1> to vector<4x32xi1>
    %131 = arith.select %130, %110, %63 : vector<4x32xi1>, vector<4x32xf32>
    %132 = vector.shape_cast %125 : vector<4x1xi1> to vector<4x1xi1>
    %133 = vector.broadcast %132 : vector<4x1xi1> to vector<4x32xi1>
    %134 = arith.select %133, %121, %66 : vector<4x32xi1>, vector<4x32xf32>
    %135 = vector.shape_cast %125 : vector<4x1xi1> to vector<4x1xi1>
    %136 = vector.broadcast %135 : vector<4x1xi1> to vector<4x32xi1>
    %137 = arith.select %136, %118, %69 : vector<4x32xi1>, vector<4x32xf32>
    %c1_i32_23 = arith.constant 1 : i32
    %138 = vector.broadcast %c1_i32_23 : i32 to vector<4x1xi32>
    %139 = arith.cmpi eq, %5, %138 : vector<4x1xi32>
    %140 = arith.andi %139, %123 : vector<4x1xi1>
    %141 = vector.shape_cast %140 : vector<4x1xi1> to vector<4x1xi1>
    %142 = vector.broadcast %141 : vector<4x1xi1> to vector<4x32xi1>
    %143 = arith.select %142, %113, %75 : vector<4x32xi1>, vector<4x32xf32>
    %c6_i32_24 = arith.constant 6 : i32
    %144 = vector.broadcast %c6_i32_24 : i32 to vector<4x1xi32>
    %145 = arith.cmpi eq, %5, %144 : vector<4x1xi32>
    %146 = arith.andi %145, %125 : vector<4x1xi1>
    %147 = vector.shape_cast %146 : vector<4x1xi1> to vector<4x1xi1>
    %148 = vector.broadcast %147 : vector<4x1xi1> to vector<4x32xi1>
    %149 = arith.select %148, %121, %81 : vector<4x32xi1>, vector<4x32xf32>
    %150 = tpu.concatenate %128, %134 in 1 : vector<4x32xf32>, vector<4x32xf32> -> vector<4x64xf32>
    %cst_25 = arith.constant dense<0.000000e+00> : vector<4x256xf32>
    %151 = tpu.matmul %150, %3, %cst_25 {dimension_numbers = #tpu.dot_dimension_numbers<[1], [0], [0], [1], [0, 0, 1, 1], [], []>} : vector<4x64xf32>, vector<64x256xf32>, vector<4x256xf32> -> vector<4x256xf32>
    %152 = vector.extract_strided_slice %2 {offsets = [8, 0], sizes = [4, 128], strides = [1, 1]} : vector<32x256xf32> to vector<4x128xf32>
    %153 = vector.extract_strided_slice %151 {offsets = [0, 0], sizes = [4, 128], strides = [1, 1]} : vector<4x256xf32> to vector<4x128xf32>
    %154 = arith.addf %152, %153 : vector<4x128xf32>
    %155 = vector.extract_strided_slice %2 {offsets = [20, 128], sizes = [4, 128], strides = [1, 1]} : vector<32x256xf32> to vector<4x128xf32>
    %156 = vector.extract_strided_slice %151 {offsets = [0, 128], sizes = [4, 128], strides = [1, 1]} : vector<4x256xf32> to vector<4x128xf32>
    %157 = arith.addf %155, %156 : vector<4x128xf32>
    %158 = vector.extract_strided_slice %154 {offsets = [0, 0], sizes = [4, 96], strides = [1, 1]} : vector<4x128xf32> to vector<4x96xf32>
    %159 = arith.negf %158 : vector<4x96xf32>
    %160 = math.exp %159 : vector<4x96xf32>
    %cst_26 = arith.constant 1.000000e+00 : f32
    %161 = vector.broadcast %cst_26 : f32 to vector<4x96xf32>
    %162 = arith.addf %161, %160 : vector<4x96xf32>
    %163 = arith.divf %161, %162 : vector<4x96xf32>
    %164 = vector.extract_strided_slice %154 {offsets = [0, 96], sizes = [4, 32], strides = [1, 1]} : vector<4x128xf32> to vector<4x32xf32>
    %165 = math.tanh %164 : vector<4x32xf32>
    %166 = vector.extract_strided_slice %157 {offsets = [0, 0], sizes = [4, 96], strides = [1, 1]} : vector<4x128xf32> to vector<4x96xf32>
    %167 = arith.negf %166 : vector<4x96xf32>
    %168 = math.exp %167 : vector<4x96xf32>
    %cst_27 = arith.constant 1.000000e+00 : f32
    %169 = vector.broadcast %cst_27 : f32 to vector<4x96xf32>
    %170 = arith.addf %169, %168 : vector<4x96xf32>
    %171 = arith.divf %169, %170 : vector<4x96xf32>
    %172 = vector.extract_strided_slice %157 {offsets = [0, 96], sizes = [4, 32], strides = [1, 1]} : vector<4x128xf32> to vector<4x32xf32>
    %173 = math.tanh %172 : vector<4x32xf32>
    %174 = vector.extract_strided_slice %163 {offsets = [0, 32], sizes = [4, 32], strides = [1, 1]} : vector<4x96xf32> to vector<4x32xf32>
    %175 = arith.mulf %174, %131 : vector<4x32xf32>
    %176 = vector.extract_strided_slice %163 {offsets = [0, 0], sizes = [4, 32], strides = [1, 1]} : vector<4x96xf32> to vector<4x32xf32>
    %177 = arith.mulf %176, %165 : vector<4x32xf32>
    %178 = arith.addf %175, %177 : vector<4x32xf32>
    %179 = vector.extract_strided_slice %163 {offsets = [0, 64], sizes = [4, 32], strides = [1, 1]} : vector<4x96xf32> to vector<4x32xf32>
    %180 = math.tanh %178 : vector<4x32xf32>
    %181 = arith.mulf %179, %180 : vector<4x32xf32>
    %182 = vector.extract_strided_slice %171 {offsets = [0, 32], sizes = [4, 32], strides = [1, 1]} : vector<4x96xf32> to vector<4x32xf32>
    %183 = arith.mulf %182, %137 : vector<4x32xf32>
    %184 = vector.extract_strided_slice %171 {offsets = [0, 0], sizes = [4, 32], strides = [1, 1]} : vector<4x96xf32> to vector<4x32xf32>
    %185 = arith.mulf %184, %173 : vector<4x32xf32>
    %186 = arith.addf %183, %185 : vector<4x32xf32>
    %187 = vector.extract_strided_slice %171 {offsets = [0, 64], sizes = [4, 32], strides = [1, 1]} : vector<4x96xf32> to vector<4x32xf32>
    %188 = math.tanh %186 : vector<4x32xf32>
    %189 = arith.mulf %187, %188 : vector<4x32xf32>
    %c2_i32 = arith.constant 2 : i32
    %190 = vector.broadcast %c2_i32 : i32 to vector<4x1xi32>
    %191 = arith.cmpi sgt, %4, %190 : vector<4x1xi32>
    %c5_i32 = arith.constant 5 : i32
    %192 = vector.broadcast %c5_i32 : i32 to vector<4x1xi32>
    %193 = arith.cmpi sgt, %4, %192 : vector<4x1xi32>
    %194 = vector.shape_cast %191 : vector<4x1xi1> to vector<4x1xi1>
    %195 = vector.broadcast %194 : vector<4x1xi1> to vector<4x32xi1>
    %196 = arith.select %195, %181, %128 : vector<4x32xi1>, vector<4x32xf32>
    %197 = vector.shape_cast %191 : vector<4x1xi1> to vector<4x1xi1>
    %198 = vector.broadcast %197 : vector<4x1xi1> to vector<4x32xi1>
    %199 = arith.select %198, %178, %131 : vector<4x32xi1>, vector<4x32xf32>
    %200 = vector.shape_cast %193 : vector<4x1xi1> to vector<4x1xi1>
    %201 = vector.broadcast %200 : vector<4x1xi1> to vector<4x32xi1>
    %202 = arith.select %201, %189, %134 : vector<4x32xi1>, vector<4x32xf32>
    %203 = vector.shape_cast %193 : vector<4x1xi1> to vector<4x1xi1>
    %204 = vector.broadcast %203 : vector<4x1xi1> to vector<4x32xi1>
    %205 = arith.select %204, %186, %137 : vector<4x32xi1>, vector<4x32xf32>
    %c2_i32_28 = arith.constant 2 : i32
    %206 = vector.broadcast %c2_i32_28 : i32 to vector<4x1xi32>
    %207 = arith.cmpi eq, %5, %206 : vector<4x1xi32>
    %208 = arith.andi %207, %191 : vector<4x1xi1>
    %209 = vector.shape_cast %208 : vector<4x1xi1> to vector<4x1xi1>
    %210 = vector.broadcast %209 : vector<4x1xi1> to vector<4x32xi1>
    %211 = arith.select %210, %181, %143 : vector<4x32xi1>, vector<4x32xf32>
    %c5_i32_29 = arith.constant 5 : i32
    %212 = vector.broadcast %c5_i32_29 : i32 to vector<4x1xi32>
    %213 = arith.cmpi eq, %5, %212 : vector<4x1xi32>
    %214 = arith.andi %213, %193 : vector<4x1xi1>
    %215 = vector.shape_cast %214 : vector<4x1xi1> to vector<4x1xi1>
    %216 = vector.broadcast %215 : vector<4x1xi1> to vector<4x32xi1>
    %217 = arith.select %216, %189, %149 : vector<4x32xi1>, vector<4x32xf32>
    %218 = tpu.concatenate %196, %202 in 1 : vector<4x32xf32>, vector<4x32xf32> -> vector<4x64xf32>
    %cst_30 = arith.constant dense<0.000000e+00> : vector<4x256xf32>
    %219 = tpu.matmul %218, %3, %cst_30 {dimension_numbers = #tpu.dot_dimension_numbers<[1], [0], [0], [1], [0, 0, 1, 1], [], []>} : vector<4x64xf32>, vector<64x256xf32>, vector<4x256xf32> -> vector<4x256xf32>
    %220 = vector.extract_strided_slice %2 {offsets = [12, 0], sizes = [4, 128], strides = [1, 1]} : vector<32x256xf32> to vector<4x128xf32>
    %221 = vector.extract_strided_slice %219 {offsets = [0, 0], sizes = [4, 128], strides = [1, 1]} : vector<4x256xf32> to vector<4x128xf32>
    %222 = arith.addf %220, %221 : vector<4x128xf32>
    %223 = vector.extract_strided_slice %2 {offsets = [16, 128], sizes = [4, 128], strides = [1, 1]} : vector<32x256xf32> to vector<4x128xf32>
    %224 = vector.extract_strided_slice %219 {offsets = [0, 128], sizes = [4, 128], strides = [1, 1]} : vector<4x256xf32> to vector<4x128xf32>
    %225 = arith.addf %223, %224 : vector<4x128xf32>
    %226 = vector.extract_strided_slice %222 {offsets = [0, 0], sizes = [4, 96], strides = [1, 1]} : vector<4x128xf32> to vector<4x96xf32>
    %227 = arith.negf %226 : vector<4x96xf32>
    %228 = math.exp %227 : vector<4x96xf32>
    %cst_31 = arith.constant 1.000000e+00 : f32
    %229 = vector.broadcast %cst_31 : f32 to vector<4x96xf32>
    %230 = arith.addf %229, %228 : vector<4x96xf32>
    %231 = arith.divf %229, %230 : vector<4x96xf32>
    %232 = vector.extract_strided_slice %222 {offsets = [0, 96], sizes = [4, 32], strides = [1, 1]} : vector<4x128xf32> to vector<4x32xf32>
    %233 = math.tanh %232 : vector<4x32xf32>
    %234 = vector.extract_strided_slice %225 {offsets = [0, 0], sizes = [4, 96], strides = [1, 1]} : vector<4x128xf32> to vector<4x96xf32>
    %235 = arith.negf %234 : vector<4x96xf32>
    %236 = math.exp %235 : vector<4x96xf32>
    %cst_32 = arith.constant 1.000000e+00 : f32
    %237 = vector.broadcast %cst_32 : f32 to vector<4x96xf32>
    %238 = arith.addf %237, %236 : vector<4x96xf32>
    %239 = arith.divf %237, %238 : vector<4x96xf32>
    %240 = vector.extract_strided_slice %225 {offsets = [0, 96], sizes = [4, 32], strides = [1, 1]} : vector<4x128xf32> to vector<4x32xf32>
    %241 = math.tanh %240 : vector<4x32xf32>
    %242 = vector.extract_strided_slice %231 {offsets = [0, 32], sizes = [4, 32], strides = [1, 1]} : vector<4x96xf32> to vector<4x32xf32>
    %243 = arith.mulf %242, %199 : vector<4x32xf32>
    %244 = vector.extract_strided_slice %231 {offsets = [0, 0], sizes = [4, 32], strides = [1, 1]} : vector<4x96xf32> to vector<4x32xf32>
    %245 = arith.mulf %244, %233 : vector<4x32xf32>
    %246 = arith.addf %243, %245 : vector<4x32xf32>
    %247 = vector.extract_strided_slice %231 {offsets = [0, 64], sizes = [4, 32], strides = [1, 1]} : vector<4x96xf32> to vector<4x32xf32>
    %248 = math.tanh %246 : vector<4x32xf32>
    %249 = arith.mulf %247, %248 : vector<4x32xf32>
    %250 = vector.extract_strided_slice %239 {offsets = [0, 32], sizes = [4, 32], strides = [1, 1]} : vector<4x96xf32> to vector<4x32xf32>
    %251 = arith.mulf %250, %205 : vector<4x32xf32>
    %252 = vector.extract_strided_slice %239 {offsets = [0, 0], sizes = [4, 32], strides = [1, 1]} : vector<4x96xf32> to vector<4x32xf32>
    %253 = arith.mulf %252, %241 : vector<4x32xf32>
    %254 = arith.addf %251, %253 : vector<4x32xf32>
    %255 = vector.extract_strided_slice %239 {offsets = [0, 64], sizes = [4, 32], strides = [1, 1]} : vector<4x96xf32> to vector<4x32xf32>
    %256 = math.tanh %254 : vector<4x32xf32>
    %257 = arith.mulf %255, %256 : vector<4x32xf32>
    %c3_i32 = arith.constant 3 : i32
    %258 = vector.broadcast %c3_i32 : i32 to vector<4x1xi32>
    %259 = arith.cmpi sgt, %4, %258 : vector<4x1xi32>
    %c4_i32 = arith.constant 4 : i32
    %260 = vector.broadcast %c4_i32 : i32 to vector<4x1xi32>
    %261 = arith.cmpi sgt, %4, %260 : vector<4x1xi32>
    %262 = vector.shape_cast %259 : vector<4x1xi1> to vector<4x1xi1>
    %263 = vector.broadcast %262 : vector<4x1xi1> to vector<4x32xi1>
    %264 = arith.select %263, %249, %196 : vector<4x32xi1>, vector<4x32xf32>
    %265 = vector.shape_cast %259 : vector<4x1xi1> to vector<4x1xi1>
    %266 = vector.broadcast %265 : vector<4x1xi1> to vector<4x32xi1>
    %267 = arith.select %266, %246, %199 : vector<4x32xi1>, vector<4x32xf32>
    %268 = vector.shape_cast %261 : vector<4x1xi1> to vector<4x1xi1>
    %269 = vector.broadcast %268 : vector<4x1xi1> to vector<4x32xi1>
    %270 = arith.select %269, %257, %202 : vector<4x32xi1>, vector<4x32xf32>
    %271 = vector.shape_cast %261 : vector<4x1xi1> to vector<4x1xi1>
    %272 = vector.broadcast %271 : vector<4x1xi1> to vector<4x32xi1>
    %273 = arith.select %272, %254, %205 : vector<4x32xi1>, vector<4x32xf32>
    %c3_i32_33 = arith.constant 3 : i32
    %274 = vector.broadcast %c3_i32_33 : i32 to vector<4x1xi32>
    %275 = arith.cmpi eq, %5, %274 : vector<4x1xi32>
    %276 = arith.andi %275, %259 : vector<4x1xi1>
    %277 = vector.shape_cast %276 : vector<4x1xi1> to vector<4x1xi1>
    %278 = vector.broadcast %277 : vector<4x1xi1> to vector<4x32xi1>
    %279 = arith.select %278, %249, %211 : vector<4x32xi1>, vector<4x32xf32>
    %c4_i32_34 = arith.constant 4 : i32
    %280 = vector.broadcast %c4_i32_34 : i32 to vector<4x1xi32>
    %281 = arith.cmpi eq, %5, %280 : vector<4x1xi32>
    %282 = arith.andi %281, %261 : vector<4x1xi1>
    %283 = vector.shape_cast %282 : vector<4x1xi1> to vector<4x1xi1>
    %284 = vector.broadcast %283 : vector<4x1xi1> to vector<4x32xi1>
    %285 = arith.select %284, %257, %217 : vector<4x32xi1>, vector<4x32xf32>
    %286 = tpu.concatenate %264, %270 in 1 : vector<4x32xf32>, vector<4x32xf32> -> vector<4x64xf32>
    %cst_35 = arith.constant dense<0.000000e+00> : vector<4x256xf32>
    %287 = tpu.matmul %286, %3, %cst_35 {dimension_numbers = #tpu.dot_dimension_numbers<[1], [0], [0], [1], [0, 0, 1, 1], [], []>} : vector<4x64xf32>, vector<64x256xf32>, vector<4x256xf32> -> vector<4x256xf32>
    %288 = vector.extract_strided_slice %2 {offsets = [16, 0], sizes = [4, 128], strides = [1, 1]} : vector<32x256xf32> to vector<4x128xf32>
    %289 = vector.extract_strided_slice %287 {offsets = [0, 0], sizes = [4, 128], strides = [1, 1]} : vector<4x256xf32> to vector<4x128xf32>
    %290 = arith.addf %288, %289 : vector<4x128xf32>
    %291 = vector.extract_strided_slice %2 {offsets = [12, 128], sizes = [4, 128], strides = [1, 1]} : vector<32x256xf32> to vector<4x128xf32>
    %292 = vector.extract_strided_slice %287 {offsets = [0, 128], sizes = [4, 128], strides = [1, 1]} : vector<4x256xf32> to vector<4x128xf32>
    %293 = arith.addf %291, %292 : vector<4x128xf32>
    %294 = vector.extract_strided_slice %290 {offsets = [0, 0], sizes = [4, 96], strides = [1, 1]} : vector<4x128xf32> to vector<4x96xf32>
    %295 = arith.negf %294 : vector<4x96xf32>
    %296 = math.exp %295 : vector<4x96xf32>
    %cst_36 = arith.constant 1.000000e+00 : f32
    %297 = vector.broadcast %cst_36 : f32 to vector<4x96xf32>
    %298 = arith.addf %297, %296 : vector<4x96xf32>
    %299 = arith.divf %297, %298 : vector<4x96xf32>
    %300 = vector.extract_strided_slice %290 {offsets = [0, 96], sizes = [4, 32], strides = [1, 1]} : vector<4x128xf32> to vector<4x32xf32>
    %301 = math.tanh %300 : vector<4x32xf32>
    %302 = vector.extract_strided_slice %293 {offsets = [0, 0], sizes = [4, 96], strides = [1, 1]} : vector<4x128xf32> to vector<4x96xf32>
    %303 = arith.negf %302 : vector<4x96xf32>
    %304 = math.exp %303 : vector<4x96xf32>
    %cst_37 = arith.constant 1.000000e+00 : f32
    %305 = vector.broadcast %cst_37 : f32 to vector<4x96xf32>
    %306 = arith.addf %305, %304 : vector<4x96xf32>
    %307 = arith.divf %305, %306 : vector<4x96xf32>
    %308 = vector.extract_strided_slice %293 {offsets = [0, 96], sizes = [4, 32], strides = [1, 1]} : vector<4x128xf32> to vector<4x32xf32>
    %309 = math.tanh %308 : vector<4x32xf32>
    %310 = vector.extract_strided_slice %299 {offsets = [0, 32], sizes = [4, 32], strides = [1, 1]} : vector<4x96xf32> to vector<4x32xf32>
    %311 = arith.mulf %310, %267 : vector<4x32xf32>
    %312 = vector.extract_strided_slice %299 {offsets = [0, 0], sizes = [4, 32], strides = [1, 1]} : vector<4x96xf32> to vector<4x32xf32>
    %313 = arith.mulf %312, %301 : vector<4x32xf32>
    %314 = arith.addf %311, %313 : vector<4x32xf32>
    %315 = vector.extract_strided_slice %299 {offsets = [0, 64], sizes = [4, 32], strides = [1, 1]} : vector<4x96xf32> to vector<4x32xf32>
    %316 = math.tanh %314 : vector<4x32xf32>
    %317 = arith.mulf %315, %316 : vector<4x32xf32>
    %318 = vector.extract_strided_slice %307 {offsets = [0, 32], sizes = [4, 32], strides = [1, 1]} : vector<4x96xf32> to vector<4x32xf32>
    %319 = arith.mulf %318, %273 : vector<4x32xf32>
    %320 = vector.extract_strided_slice %307 {offsets = [0, 0], sizes = [4, 32], strides = [1, 1]} : vector<4x96xf32> to vector<4x32xf32>
    %321 = arith.mulf %320, %309 : vector<4x32xf32>
    %322 = arith.addf %319, %321 : vector<4x32xf32>
    %323 = vector.extract_strided_slice %307 {offsets = [0, 64], sizes = [4, 32], strides = [1, 1]} : vector<4x96xf32> to vector<4x32xf32>
    %324 = math.tanh %322 : vector<4x32xf32>
    %325 = arith.mulf %323, %324 : vector<4x32xf32>
    %c4_i32_38 = arith.constant 4 : i32
    %326 = vector.broadcast %c4_i32_38 : i32 to vector<4x1xi32>
    %327 = arith.cmpi sgt, %4, %326 : vector<4x1xi32>
    %c3_i32_39 = arith.constant 3 : i32
    %328 = vector.broadcast %c3_i32_39 : i32 to vector<4x1xi32>
    %329 = arith.cmpi sgt, %4, %328 : vector<4x1xi32>
    %330 = vector.shape_cast %327 : vector<4x1xi1> to vector<4x1xi1>
    %331 = vector.broadcast %330 : vector<4x1xi1> to vector<4x32xi1>
    %332 = arith.select %331, %317, %264 : vector<4x32xi1>, vector<4x32xf32>
    %333 = vector.shape_cast %327 : vector<4x1xi1> to vector<4x1xi1>
    %334 = vector.broadcast %333 : vector<4x1xi1> to vector<4x32xi1>
    %335 = arith.select %334, %314, %267 : vector<4x32xi1>, vector<4x32xf32>
    %336 = vector.shape_cast %329 : vector<4x1xi1> to vector<4x1xi1>
    %337 = vector.broadcast %336 : vector<4x1xi1> to vector<4x32xi1>
    %338 = arith.select %337, %325, %270 : vector<4x32xi1>, vector<4x32xf32>
    %339 = vector.shape_cast %329 : vector<4x1xi1> to vector<4x1xi1>
    %340 = vector.broadcast %339 : vector<4x1xi1> to vector<4x32xi1>
    %341 = arith.select %340, %322, %273 : vector<4x32xi1>, vector<4x32xf32>
    %c4_i32_40 = arith.constant 4 : i32
    %342 = vector.broadcast %c4_i32_40 : i32 to vector<4x1xi32>
    %343 = arith.cmpi eq, %5, %342 : vector<4x1xi32>
    %344 = arith.andi %343, %327 : vector<4x1xi1>
    %345 = vector.shape_cast %344 : vector<4x1xi1> to vector<4x1xi1>
    %346 = vector.broadcast %345 : vector<4x1xi1> to vector<4x32xi1>
    %347 = arith.select %346, %317, %279 : vector<4x32xi1>, vector<4x32xf32>
    %c3_i32_41 = arith.constant 3 : i32
    %348 = vector.broadcast %c3_i32_41 : i32 to vector<4x1xi32>
    %349 = arith.cmpi eq, %5, %348 : vector<4x1xi32>
    %350 = arith.andi %349, %329 : vector<4x1xi1>
    %351 = vector.shape_cast %350 : vector<4x1xi1> to vector<4x1xi1>
    %352 = vector.broadcast %351 : vector<4x1xi1> to vector<4x32xi1>
    %353 = arith.select %352, %325, %285 : vector<4x32xi1>, vector<4x32xf32>
    %354 = tpu.concatenate %332, %338 in 1 : vector<4x32xf32>, vector<4x32xf32> -> vector<4x64xf32>
    %cst_42 = arith.constant dense<0.000000e+00> : vector<4x256xf32>
    %355 = tpu.matmul %354, %3, %cst_42 {dimension_numbers = #tpu.dot_dimension_numbers<[1], [0], [0], [1], [0, 0, 1, 1], [], []>} : vector<4x64xf32>, vector<64x256xf32>, vector<4x256xf32> -> vector<4x256xf32>
    %356 = vector.extract_strided_slice %2 {offsets = [20, 0], sizes = [4, 128], strides = [1, 1]} : vector<32x256xf32> to vector<4x128xf32>
    %357 = vector.extract_strided_slice %355 {offsets = [0, 0], sizes = [4, 128], strides = [1, 1]} : vector<4x256xf32> to vector<4x128xf32>
    %358 = arith.addf %356, %357 : vector<4x128xf32>
    %359 = vector.extract_strided_slice %2 {offsets = [8, 128], sizes = [4, 128], strides = [1, 1]} : vector<32x256xf32> to vector<4x128xf32>
    %360 = vector.extract_strided_slice %355 {offsets = [0, 128], sizes = [4, 128], strides = [1, 1]} : vector<4x256xf32> to vector<4x128xf32>
    %361 = arith.addf %359, %360 : vector<4x128xf32>
    %362 = vector.extract_strided_slice %358 {offsets = [0, 0], sizes = [4, 96], strides = [1, 1]} : vector<4x128xf32> to vector<4x96xf32>
    %363 = arith.negf %362 : vector<4x96xf32>
    %364 = math.exp %363 : vector<4x96xf32>
    %cst_43 = arith.constant 1.000000e+00 : f32
    %365 = vector.broadcast %cst_43 : f32 to vector<4x96xf32>
    %366 = arith.addf %365, %364 : vector<4x96xf32>
    %367 = arith.divf %365, %366 : vector<4x96xf32>
    %368 = vector.extract_strided_slice %358 {offsets = [0, 96], sizes = [4, 32], strides = [1, 1]} : vector<4x128xf32> to vector<4x32xf32>
    %369 = math.tanh %368 : vector<4x32xf32>
    %370 = vector.extract_strided_slice %361 {offsets = [0, 0], sizes = [4, 96], strides = [1, 1]} : vector<4x128xf32> to vector<4x96xf32>
    %371 = arith.negf %370 : vector<4x96xf32>
    %372 = math.exp %371 : vector<4x96xf32>
    %cst_44 = arith.constant 1.000000e+00 : f32
    %373 = vector.broadcast %cst_44 : f32 to vector<4x96xf32>
    %374 = arith.addf %373, %372 : vector<4x96xf32>
    %375 = arith.divf %373, %374 : vector<4x96xf32>
    %376 = vector.extract_strided_slice %361 {offsets = [0, 96], sizes = [4, 32], strides = [1, 1]} : vector<4x128xf32> to vector<4x32xf32>
    %377 = math.tanh %376 : vector<4x32xf32>
    %378 = vector.extract_strided_slice %367 {offsets = [0, 32], sizes = [4, 32], strides = [1, 1]} : vector<4x96xf32> to vector<4x32xf32>
    %379 = arith.mulf %378, %335 : vector<4x32xf32>
    %380 = vector.extract_strided_slice %367 {offsets = [0, 0], sizes = [4, 32], strides = [1, 1]} : vector<4x96xf32> to vector<4x32xf32>
    %381 = arith.mulf %380, %369 : vector<4x32xf32>
    %382 = arith.addf %379, %381 : vector<4x32xf32>
    %383 = vector.extract_strided_slice %367 {offsets = [0, 64], sizes = [4, 32], strides = [1, 1]} : vector<4x96xf32> to vector<4x32xf32>
    %384 = math.tanh %382 : vector<4x32xf32>
    %385 = arith.mulf %383, %384 : vector<4x32xf32>
    %386 = vector.extract_strided_slice %375 {offsets = [0, 32], sizes = [4, 32], strides = [1, 1]} : vector<4x96xf32> to vector<4x32xf32>
    %387 = arith.mulf %386, %341 : vector<4x32xf32>
    %388 = vector.extract_strided_slice %375 {offsets = [0, 0], sizes = [4, 32], strides = [1, 1]} : vector<4x96xf32> to vector<4x32xf32>
    %389 = arith.mulf %388, %377 : vector<4x32xf32>
    %390 = arith.addf %387, %389 : vector<4x32xf32>
    %391 = vector.extract_strided_slice %375 {offsets = [0, 64], sizes = [4, 32], strides = [1, 1]} : vector<4x96xf32> to vector<4x32xf32>
    %392 = math.tanh %390 : vector<4x32xf32>
    %393 = arith.mulf %391, %392 : vector<4x32xf32>
    %c5_i32_45 = arith.constant 5 : i32
    %394 = vector.broadcast %c5_i32_45 : i32 to vector<4x1xi32>
    %395 = arith.cmpi sgt, %4, %394 : vector<4x1xi32>
    %c2_i32_46 = arith.constant 2 : i32
    %396 = vector.broadcast %c2_i32_46 : i32 to vector<4x1xi32>
    %397 = arith.cmpi sgt, %4, %396 : vector<4x1xi32>
    %398 = vector.shape_cast %395 : vector<4x1xi1> to vector<4x1xi1>
    %399 = vector.broadcast %398 : vector<4x1xi1> to vector<4x32xi1>
    %400 = arith.select %399, %385, %332 : vector<4x32xi1>, vector<4x32xf32>
    %401 = vector.shape_cast %395 : vector<4x1xi1> to vector<4x1xi1>
    %402 = vector.broadcast %401 : vector<4x1xi1> to vector<4x32xi1>
    %403 = arith.select %402, %382, %335 : vector<4x32xi1>, vector<4x32xf32>
    %404 = vector.shape_cast %397 : vector<4x1xi1> to vector<4x1xi1>
    %405 = vector.broadcast %404 : vector<4x1xi1> to vector<4x32xi1>
    %406 = arith.select %405, %393, %338 : vector<4x32xi1>, vector<4x32xf32>
    %407 = vector.shape_cast %397 : vector<4x1xi1> to vector<4x1xi1>
    %408 = vector.broadcast %407 : vector<4x1xi1> to vector<4x32xi1>
    %409 = arith.select %408, %390, %341 : vector<4x32xi1>, vector<4x32xf32>
    %c5_i32_47 = arith.constant 5 : i32
    %410 = vector.broadcast %c5_i32_47 : i32 to vector<4x1xi32>
    %411 = arith.cmpi eq, %5, %410 : vector<4x1xi32>
    %412 = arith.andi %411, %395 : vector<4x1xi1>
    %413 = vector.shape_cast %412 : vector<4x1xi1> to vector<4x1xi1>
    %414 = vector.broadcast %413 : vector<4x1xi1> to vector<4x32xi1>
    %415 = arith.select %414, %385, %347 : vector<4x32xi1>, vector<4x32xf32>
    %c2_i32_48 = arith.constant 2 : i32
    %416 = vector.broadcast %c2_i32_48 : i32 to vector<4x1xi32>
    %417 = arith.cmpi eq, %5, %416 : vector<4x1xi32>
    %418 = arith.andi %417, %397 : vector<4x1xi1>
    %419 = vector.shape_cast %418 : vector<4x1xi1> to vector<4x1xi1>
    %420 = vector.broadcast %419 : vector<4x1xi1> to vector<4x32xi1>
    %421 = arith.select %420, %393, %353 : vector<4x32xi1>, vector<4x32xf32>
    %422 = tpu.concatenate %400, %406 in 1 : vector<4x32xf32>, vector<4x32xf32> -> vector<4x64xf32>
    %cst_49 = arith.constant dense<0.000000e+00> : vector<4x256xf32>
    %423 = tpu.matmul %422, %3, %cst_49 {dimension_numbers = #tpu.dot_dimension_numbers<[1], [0], [0], [1], [0, 0, 1, 1], [], []>} : vector<4x64xf32>, vector<64x256xf32>, vector<4x256xf32> -> vector<4x256xf32>
    %424 = vector.extract_strided_slice %2 {offsets = [24, 0], sizes = [4, 128], strides = [1, 1]} : vector<32x256xf32> to vector<4x128xf32>
    %425 = vector.extract_strided_slice %423 {offsets = [0, 0], sizes = [4, 128], strides = [1, 1]} : vector<4x256xf32> to vector<4x128xf32>
    %426 = arith.addf %424, %425 : vector<4x128xf32>
    %427 = vector.extract_strided_slice %2 {offsets = [4, 128], sizes = [4, 128], strides = [1, 1]} : vector<32x256xf32> to vector<4x128xf32>
    %428 = vector.extract_strided_slice %423 {offsets = [0, 128], sizes = [4, 128], strides = [1, 1]} : vector<4x256xf32> to vector<4x128xf32>
    %429 = arith.addf %427, %428 : vector<4x128xf32>
    %430 = vector.extract_strided_slice %426 {offsets = [0, 0], sizes = [4, 96], strides = [1, 1]} : vector<4x128xf32> to vector<4x96xf32>
    %431 = arith.negf %430 : vector<4x96xf32>
    %432 = math.exp %431 : vector<4x96xf32>
    %cst_50 = arith.constant 1.000000e+00 : f32
    %433 = vector.broadcast %cst_50 : f32 to vector<4x96xf32>
    %434 = arith.addf %433, %432 : vector<4x96xf32>
    %435 = arith.divf %433, %434 : vector<4x96xf32>
    %436 = vector.extract_strided_slice %426 {offsets = [0, 96], sizes = [4, 32], strides = [1, 1]} : vector<4x128xf32> to vector<4x32xf32>
    %437 = math.tanh %436 : vector<4x32xf32>
    %438 = vector.extract_strided_slice %429 {offsets = [0, 0], sizes = [4, 96], strides = [1, 1]} : vector<4x128xf32> to vector<4x96xf32>
    %439 = arith.negf %438 : vector<4x96xf32>
    %440 = math.exp %439 : vector<4x96xf32>
    %cst_51 = arith.constant 1.000000e+00 : f32
    %441 = vector.broadcast %cst_51 : f32 to vector<4x96xf32>
    %442 = arith.addf %441, %440 : vector<4x96xf32>
    %443 = arith.divf %441, %442 : vector<4x96xf32>
    %444 = vector.extract_strided_slice %429 {offsets = [0, 96], sizes = [4, 32], strides = [1, 1]} : vector<4x128xf32> to vector<4x32xf32>
    %445 = math.tanh %444 : vector<4x32xf32>
    %446 = vector.extract_strided_slice %435 {offsets = [0, 32], sizes = [4, 32], strides = [1, 1]} : vector<4x96xf32> to vector<4x32xf32>
    %447 = arith.mulf %446, %403 : vector<4x32xf32>
    %448 = vector.extract_strided_slice %435 {offsets = [0, 0], sizes = [4, 32], strides = [1, 1]} : vector<4x96xf32> to vector<4x32xf32>
    %449 = arith.mulf %448, %437 : vector<4x32xf32>
    %450 = arith.addf %447, %449 : vector<4x32xf32>
    %451 = vector.extract_strided_slice %435 {offsets = [0, 64], sizes = [4, 32], strides = [1, 1]} : vector<4x96xf32> to vector<4x32xf32>
    %452 = math.tanh %450 : vector<4x32xf32>
    %453 = arith.mulf %451, %452 : vector<4x32xf32>
    %454 = vector.extract_strided_slice %443 {offsets = [0, 32], sizes = [4, 32], strides = [1, 1]} : vector<4x96xf32> to vector<4x32xf32>
    %455 = arith.mulf %454, %409 : vector<4x32xf32>
    %456 = vector.extract_strided_slice %443 {offsets = [0, 0], sizes = [4, 32], strides = [1, 1]} : vector<4x96xf32> to vector<4x32xf32>
    %457 = arith.mulf %456, %445 : vector<4x32xf32>
    %458 = arith.addf %455, %457 : vector<4x32xf32>
    %459 = vector.extract_strided_slice %443 {offsets = [0, 64], sizes = [4, 32], strides = [1, 1]} : vector<4x96xf32> to vector<4x32xf32>
    %460 = math.tanh %458 : vector<4x32xf32>
    %461 = arith.mulf %459, %460 : vector<4x32xf32>
    %c6_i32_52 = arith.constant 6 : i32
    %462 = vector.broadcast %c6_i32_52 : i32 to vector<4x1xi32>
    %463 = arith.cmpi sgt, %4, %462 : vector<4x1xi32>
    %c1_i32_53 = arith.constant 1 : i32
    %464 = vector.broadcast %c1_i32_53 : i32 to vector<4x1xi32>
    %465 = arith.cmpi sgt, %4, %464 : vector<4x1xi32>
    %466 = vector.shape_cast %463 : vector<4x1xi1> to vector<4x1xi1>
    %467 = vector.broadcast %466 : vector<4x1xi1> to vector<4x32xi1>
    %468 = arith.select %467, %453, %400 : vector<4x32xi1>, vector<4x32xf32>
    %469 = vector.shape_cast %463 : vector<4x1xi1> to vector<4x1xi1>
    %470 = vector.broadcast %469 : vector<4x1xi1> to vector<4x32xi1>
    %471 = arith.select %470, %450, %403 : vector<4x32xi1>, vector<4x32xf32>
    %472 = vector.shape_cast %465 : vector<4x1xi1> to vector<4x1xi1>
    %473 = vector.broadcast %472 : vector<4x1xi1> to vector<4x32xi1>
    %474 = arith.select %473, %461, %406 : vector<4x32xi1>, vector<4x32xf32>
    %475 = vector.shape_cast %465 : vector<4x1xi1> to vector<4x1xi1>
    %476 = vector.broadcast %475 : vector<4x1xi1> to vector<4x32xi1>
    %477 = arith.select %476, %458, %409 : vector<4x32xi1>, vector<4x32xf32>
    %c6_i32_54 = arith.constant 6 : i32
    %478 = vector.broadcast %c6_i32_54 : i32 to vector<4x1xi32>
    %479 = arith.cmpi eq, %5, %478 : vector<4x1xi32>
    %480 = arith.andi %479, %463 : vector<4x1xi1>
    %481 = vector.shape_cast %480 : vector<4x1xi1> to vector<4x1xi1>
    %482 = vector.broadcast %481 : vector<4x1xi1> to vector<4x32xi1>
    %483 = arith.select %482, %453, %415 : vector<4x32xi1>, vector<4x32xf32>
    %c1_i32_55 = arith.constant 1 : i32
    %484 = vector.broadcast %c1_i32_55 : i32 to vector<4x1xi32>
    %485 = arith.cmpi eq, %5, %484 : vector<4x1xi32>
    %486 = arith.andi %485, %465 : vector<4x1xi1>
    %487 = vector.shape_cast %486 : vector<4x1xi1> to vector<4x1xi1>
    %488 = vector.broadcast %487 : vector<4x1xi1> to vector<4x32xi1>
    %489 = arith.select %488, %461, %421 : vector<4x32xi1>, vector<4x32xf32>
    %490 = tpu.concatenate %468, %474 in 1 : vector<4x32xf32>, vector<4x32xf32> -> vector<4x64xf32>
    %cst_56 = arith.constant dense<0.000000e+00> : vector<4x256xf32>
    %491 = tpu.matmul %490, %3, %cst_56 {dimension_numbers = #tpu.dot_dimension_numbers<[1], [0], [0], [1], [0, 0, 1, 1], [], []>} : vector<4x64xf32>, vector<64x256xf32>, vector<4x256xf32> -> vector<4x256xf32>
    %492 = vector.extract_strided_slice %2 {offsets = [28, 0], sizes = [4, 128], strides = [1, 1]} : vector<32x256xf32> to vector<4x128xf32>
    %493 = vector.extract_strided_slice %491 {offsets = [0, 0], sizes = [4, 128], strides = [1, 1]} : vector<4x256xf32> to vector<4x128xf32>
    %494 = arith.addf %492, %493 : vector<4x128xf32>
    %495 = vector.extract_strided_slice %2 {offsets = [0, 128], sizes = [4, 128], strides = [1, 1]} : vector<32x256xf32> to vector<4x128xf32>
    %496 = vector.extract_strided_slice %491 {offsets = [0, 128], sizes = [4, 128], strides = [1, 1]} : vector<4x256xf32> to vector<4x128xf32>
    %497 = arith.addf %495, %496 : vector<4x128xf32>
    %498 = vector.extract_strided_slice %494 {offsets = [0, 0], sizes = [4, 96], strides = [1, 1]} : vector<4x128xf32> to vector<4x96xf32>
    %499 = arith.negf %498 : vector<4x96xf32>
    %500 = math.exp %499 : vector<4x96xf32>
    %cst_57 = arith.constant 1.000000e+00 : f32
    %501 = vector.broadcast %cst_57 : f32 to vector<4x96xf32>
    %502 = arith.addf %501, %500 : vector<4x96xf32>
    %503 = arith.divf %501, %502 : vector<4x96xf32>
    %504 = vector.extract_strided_slice %494 {offsets = [0, 96], sizes = [4, 32], strides = [1, 1]} : vector<4x128xf32> to vector<4x32xf32>
    %505 = math.tanh %504 : vector<4x32xf32>
    %506 = vector.extract_strided_slice %497 {offsets = [0, 0], sizes = [4, 96], strides = [1, 1]} : vector<4x128xf32> to vector<4x96xf32>
    %507 = arith.negf %506 : vector<4x96xf32>
    %508 = math.exp %507 : vector<4x96xf32>
    %cst_58 = arith.constant 1.000000e+00 : f32
    %509 = vector.broadcast %cst_58 : f32 to vector<4x96xf32>
    %510 = arith.addf %509, %508 : vector<4x96xf32>
    %511 = arith.divf %509, %510 : vector<4x96xf32>
    %512 = vector.extract_strided_slice %497 {offsets = [0, 96], sizes = [4, 32], strides = [1, 1]} : vector<4x128xf32> to vector<4x32xf32>
    %513 = math.tanh %512 : vector<4x32xf32>
    %514 = vector.extract_strided_slice %503 {offsets = [0, 32], sizes = [4, 32], strides = [1, 1]} : vector<4x96xf32> to vector<4x32xf32>
    %515 = arith.mulf %514, %471 : vector<4x32xf32>
    %516 = vector.extract_strided_slice %503 {offsets = [0, 0], sizes = [4, 32], strides = [1, 1]} : vector<4x96xf32> to vector<4x32xf32>
    %517 = arith.mulf %516, %505 : vector<4x32xf32>
    %518 = arith.addf %515, %517 : vector<4x32xf32>
    %519 = vector.extract_strided_slice %503 {offsets = [0, 64], sizes = [4, 32], strides = [1, 1]} : vector<4x96xf32> to vector<4x32xf32>
    %520 = math.tanh %518 : vector<4x32xf32>
    %521 = arith.mulf %519, %520 : vector<4x32xf32>
    %522 = vector.extract_strided_slice %511 {offsets = [0, 32], sizes = [4, 32], strides = [1, 1]} : vector<4x96xf32> to vector<4x32xf32>
    %523 = arith.mulf %522, %477 : vector<4x32xf32>
    %524 = vector.extract_strided_slice %511 {offsets = [0, 0], sizes = [4, 32], strides = [1, 1]} : vector<4x96xf32> to vector<4x32xf32>
    %525 = arith.mulf %524, %513 : vector<4x32xf32>
    %526 = arith.addf %523, %525 : vector<4x32xf32>
    %527 = vector.extract_strided_slice %511 {offsets = [0, 64], sizes = [4, 32], strides = [1, 1]} : vector<4x96xf32> to vector<4x32xf32>
    %528 = math.tanh %526 : vector<4x32xf32>
    %529 = arith.mulf %527, %528 : vector<4x32xf32>
    %c7_i32_59 = arith.constant 7 : i32
    %530 = vector.broadcast %c7_i32_59 : i32 to vector<4x1xi32>
    %531 = arith.cmpi sgt, %4, %530 : vector<4x1xi32>
    %c0_i32_60 = arith.constant 0 : i32
    %532 = vector.broadcast %c0_i32_60 : i32 to vector<4x1xi32>
    %533 = arith.cmpi sgt, %4, %532 : vector<4x1xi32>
    %c7_i32_61 = arith.constant 7 : i32
    %534 = vector.broadcast %c7_i32_61 : i32 to vector<4x1xi32>
    %535 = arith.cmpi eq, %5, %534 : vector<4x1xi32>
    %536 = arith.andi %535, %531 : vector<4x1xi1>
    %537 = vector.shape_cast %536 : vector<4x1xi1> to vector<4x1xi1>
    %538 = vector.broadcast %537 : vector<4x1xi1> to vector<4x32xi1>
    %539 = arith.select %538, %521, %483 : vector<4x32xi1>, vector<4x32xf32>
    %c0_i32_62 = arith.constant 0 : i32
    %540 = vector.broadcast %c0_i32_62 : i32 to vector<4x1xi32>
    %541 = arith.cmpi eq, %5, %540 : vector<4x1xi32>
    %542 = arith.andi %541, %533 : vector<4x1xi1>
    %543 = vector.shape_cast %542 : vector<4x1xi1> to vector<4x1xi1>
    %544 = vector.broadcast %543 : vector<4x1xi1> to vector<4x32xi1>
    %545 = arith.select %544, %529, %489 : vector<4x32xi1>, vector<4x32xf32>
    %546 = vector.extract_strided_slice %539 {offsets = [0, 0], sizes = [2, 32], strides = [1, 1]} : vector<4x32xf32> to vector<2x32xf32>
    %547 = vector.extract_strided_slice %545 {offsets = [0, 0], sizes = [2, 32], strides = [1, 1]} : vector<4x32xf32> to vector<2x32xf32>
    %548 = vector.extract_strided_slice %539 {offsets = [2, 0], sizes = [2, 32], strides = [1, 1]} : vector<4x32xf32> to vector<2x32xf32>
    %549 = vector.extract_strided_slice %545 {offsets = [2, 0], sizes = [2, 32], strides = [1, 1]} : vector<4x32xf32> to vector<2x32xf32>
    %550 = tpu.concatenate %546, %547, %548, %549 in 1 : vector<2x32xf32>, vector<2x32xf32>, vector<2x32xf32>, vector<2x32xf32> -> vector<2x128xf32>
    %c0_63 = arith.constant 0 : index
    %c0_64 = arith.constant 0 : index
    %551 = vector.load %arg7[%c0_63, %c0_64] : memref<128x16xf32, #tpu.memory_space<vmem>>, vector<128x16xf32>
    %cst_65 = arith.constant dense<0.000000e+00> : vector<2x16xf32>
    %552 = tpu.matmul %550, %551, %cst_65 {dimension_numbers = #tpu.dot_dimension_numbers<[1], [0], [0], [1], [0, 0, 1, 1], [], []>} : vector<2x128xf32>, vector<128x16xf32>, vector<2x16xf32> -> vector<2x16xf32>
    %cst_66 = arith.constant 0.000000e+00 : f32
    %553 = vector.broadcast %cst_66 : f32 to vector<2x16xf32>
    %554 = arith.maximumf %552, %553 : vector<2x16xf32>
    %c0_67 = arith.constant 0 : index
    %c0_68 = arith.constant 0 : index
    %555 = vector.load %arg8[%c0_67, %c0_68] : memref<16x8xf32, #tpu.memory_space<vmem>>, vector<16x8xf32>
    %cst_69 = arith.constant dense<0.000000e+00> : vector<2x8xf32>
    %556 = tpu.matmul %554, %555, %cst_69 {dimension_numbers = #tpu.dot_dimension_numbers<[1], [0], [0], [1], [0, 0, 1, 1], [], []>} : vector<2x16xf32>, vector<16x8xf32>, vector<2x8xf32> -> vector<2x8xf32>
    %cst_70 = arith.constant 0.000000e+00 : f32
    %557 = vector.broadcast %cst_70 : f32 to vector<2x8xf32>
    %558 = arith.maximumf %556, %557 : vector<2x8xf32>
    %c0_71 = arith.constant 0 : index
    %c0_72 = arith.constant 0 : index
    %559 = vector.load %arg9[%c0_71, %c0_72] : memref<8x2xf32, #tpu.memory_space<vmem>>, vector<8x2xf32>
    %cst_73 = arith.constant dense<0.000000e+00> : vector<2x2xf32>
    %560 = tpu.matmul %558, %559, %cst_73 {dimension_numbers = #tpu.dot_dimension_numbers<[1], [0], [0], [1], [0, 0, 1, 1], [], []>} : vector<2x8xf32>, vector<8x2xf32>, vector<2x2xf32> -> vector<2x2xf32>
    %c0_74 = arith.constant 0 : index
    %c0_75 = arith.constant 0 : index
    %561 = vector.load %arg10[%c0_74, %c0_75] : memref<2x2xf32, #tpu.memory_space<vmem>>, vector<2x2xf32>
    tpu.vector_store %arg10[%c0_74, %c0_75], %560 {strides = array<i32>} : memref<2x2xf32, #tpu.memory_space<vmem>>, vector<2x2xf32>,
    %cst_76 = arith.constant dense<0xFF800000> : vector<2xf32>
    %562 = vector.multi_reduction <maximumf>, %560, %cst_76 [1] : vector<2x2xf32> to vector<2xf32>
    %563 = vector.shape_cast %562 : vector<2xf32> to vector<2x1xf32>
    %564 = vector.broadcast %563 : vector<2x1xf32> to vector<2x2xf32>
    %565 = arith.subf %560, %564 : vector<2x2xf32>
    %566 = math.exp %565 : vector<2x2xf32>
    %cst_77 = arith.constant dense<0.000000e+00> : vector<2xf32>
    %567 = vector.multi_reduction <add>, %566, %cst_77 [1] : vector<2x2xf32> to vector<2xf32>
    %568 = vector.shape_cast %567 : vector<2xf32> to vector<2x1xf32>
    %569 = tpu.reciprocal %568 : vector<2x1xf32> -> vector<2x1xf32>
    %570 = vector.broadcast %569 : vector<2x1xf32> to vector<2x2xf32>
    %571 = arith.mulf %566, %570 : vector<2x2xf32>
    %c0_78 = arith.constant 0 : index
    %c0_79 = arith.constant 0 : index
    %572 = vector.load %arg11[%c0_78, %c0_79] : memref<2x2xf32, #tpu.memory_space<vmem>>, vector<2x2xf32>
    tpu.vector_store %arg11[%c0_78, %c0_79], %571 {strides = array<i32>} : memref<2x2xf32, #tpu.memory_space<vmem>>, vector<2x2xf32>,
    return
  }
}

</mosaic_0001>

<llo_original>
// kernel: model_a2m1_forward.1
$region0: #{model_a2m1_forward.1}
  #allocation0 [shape = 'u32[]', space=smem, size = 0x4, offset = 0x4, fixed_abs, tag = 'smem constant byte address 0x4 - core index']
  #allocation1 [shape = 'u32[72,128]{1,0:T(1,128)}', space=vmem, size = 0x9000, scoped, tag = 'internal scratch']
  %s0 = inlined_call_operand.vmem [shape: f32[32,32], index: 0, kind: input, shape index: {}]
  %s1 = inlined_call_operand.vmem [shape: s32[4,1], index: 1, kind: input, shape index: {}]
  %s2 = inlined_call_operand.vmem [shape: s32[4,1], index: 2, kind: input, shape index: {}]
  %s3 = inlined_call_operand.vmem [shape: f32[32,256], index: 3, kind: input, shape index: {}]
  %s4 = inlined_call_operand.vmem [shape: f32[64,256], index: 4, kind: input, shape index: {}]
  %s5 = inlined_call_operand.vmem [shape: f32[4,64], index: 5, kind: input, shape index: {}]
  %s6 = inlined_call_operand.vmem [shape: f32[4,64], index: 6, kind: input, shape index: {}]
  %s7 = inlined_call_operand.vmem [shape: f32[128,16], index: 7, kind: input, shape index: {}]
  %s8 = inlined_call_operand.vmem [shape: f32[16,8], index: 8, kind: input, shape index: {}]
  %s9 = inlined_call_operand.vmem [shape: f32[8,2], index: 9, kind: input, shape index: {}]
  %s10 = inlined_call_operand.hbm [shape: f32[2,2], index: 10, kind: output, shape index: {0}]
  %s11 = inlined_call_operand.hbm [shape: f32[2,2], index: 11, kind: output, shape index: {1}]
  %12 = xla_tuple %s10, %s11
  %s13 = sld [smem:[#allocation0]]
  $region58: #{model_a2m1_forward.1} parent=0
    _
  %s15 = ssub.s32 1, %s13
  %s16 = scalar_select 0, %s15, %s13
  $region1: #{model_a2m1_forward.1} parent=0
    #allocation2 [shape = 'u8[1024]{0}', space=vmem, size = 0x400, scoped, tag = 'output window, operand 0, single buffered']
    #allocation3 [shape = 's32[1]{0}', space=sflag, size = 0x4, scoped, tag = 'scoped memory for model_a2m1_forward.1']
    #allocation4 [shape = 'u8[1024]{0}', space=vmem, size = 0x400, scoped, tag = 'output window, operand 1, single buffered']
    #allocation5 [shape = 's32[1]{0}', space=sflag, size = 0x4, scoped, tag = 'scoped memory for model_a2m1_forward.1']
    %17 = vsyncpa [#allocation3], 0
    %18 = vsyncpa [#allocation5], 0
    // Predicated region
    $region2: #{model_a2m1_forward.1} parent=1 // pred_check
      _
    $region3: #{model_a2m1_forward.1} parent=1 // pred_check_branch
      %20 = sbr.rel (0) target = $region5
    $region4: #{model_a2m1_forward.1} parent=1 // pred_region
      _
    $region5: #{model_a2m1_forward.1} parent=1 // pred_fallthru
      _
    // Predicated region
    $region6: #{model_a2m1_forward.1} parent=1 // pred_check
      _
    $region7: #{model_a2m1_forward.1} parent=1 // pred_check_branch
      %22 = sbr.rel (0) target = $region9
    $region8: #{model_a2m1_forward.1} parent=1 // pred_region
      _
    $region9: #{model_a2m1_forward.1} parent=1 // pred_fallthru
      _
    // Predicated region
    $region10: #{model_a2m1_forward.1} parent=1 // pred_check
      _
    $region11: #{model_a2m1_forward.1} parent=1 // pred_check_branch
      %24 = sbr.rel (0) target = $region13
    $region12: #{model_a2m1_forward.1} parent=1 // pred_region
      _
    $region13: #{model_a2m1_forward.1} parent=1 // pred_fallthru
      _
    // Predicated region
    $region14: #{model_a2m1_forward.1} parent=1 // pred_check
      _
    $region15: #{model_a2m1_forward.1} parent=1 // pred_check_branch
      %26 = sbr.rel (0) target = $region17
    $region16: #{model_a2m1_forward.1} parent=1 // pred_region
      _
    $region17: #{model_a2m1_forward.1} parent=1 // pred_fallthru
      _
    // Predicated region
    $region18: #{model_a2m1_forward.1} parent=1 // pred_check
      _
    $region19: #{model_a2m1_forward.1} parent=1 // pred_check_branch
      %28 = sbr.rel (0) target = $region21
    $region20: #{model_a2m1_forward.1} parent=1 // pred_region
      _
    $region21: #{model_a2m1_forward.1} parent=1 // pred_fallthru
      _
    // Predicated region
    $region22: #{model_a2m1_forward.1} parent=1 // pred_check
      _
    $region23: #{model_a2m1_forward.1} parent=1 // pred_check_branch
      %30 = sbr.rel (0) target = $region25
    $region24: #{model_a2m1_forward.1} parent=1 // pred_region
      _
    $region25: #{model_a2m1_forward.1} parent=1 // pred_fallthru
      _
    // Predicated region
    $region26: #{model_a2m1_forward.1} parent=1 // pred_check
      _
    $region27: #{model_a2m1_forward.1} parent=1 // pred_check_branch
      %32 = sbr.rel (0) target = $region29
    $region28: #{model_a2m1_forward.1} parent=1 // pred_region
      _
    $region29: #{model_a2m1_forward.1} parent=1 // pred_fallthru
      _
    // Predicated region
    $region30: #{model_a2m1_forward.1} parent=1 // pred_check
      _
    $region31: #{model_a2m1_forward.1} parent=1 // pred_check_branch
      %34 = sbr.rel (0) target = $region33
    $region32: #{model_a2m1_forward.1} parent=1 // pred_region
      _
    $region33: #{model_a2m1_forward.1} parent=1 // pred_fallthru
      _
    // Predicated region
    $region34: #{model_a2m1_forward.1} parent=1 // pred_check
      _
    $region35: #{model_a2m1_forward.1} parent=1 // pred_check_branch
      %36 = sbr.rel (0) target = $region37
    $region36: #{model_a2m1_forward.1} parent=1 // pred_region
      _
    $region37: #{model_a2m1_forward.1} parent=1 // pred_fallthru
      _
    // Predicated region
    $region38: #{model_a2m1_forward.1} parent=1 // pred_check
      _
    $region39: #{model_a2m1_forward.1} parent=1 // pred_check_branch
      %38 = sbr.rel (0) target = $region41
    $region40: #{model_a2m1_forward.1} parent=1 // pred_region
      _
    $region41: #{model_a2m1_forward.1} parent=1 // pred_fallthru
      _
    %v39 = vld [vmem:[%s0] sm:$0xff]
    %v40 = vld [vmem:[%s0 + $0x8] sm:$0xff]
    %v41 = vld [vmem:[%s0 + $0x10] sm:$0xff]
    %v42 = vld [vmem:[%s0 + $0x18] sm:$0xff]
    %v43 = vld [vmem:[%s3] sm:$0xff]
    %v44 = vld [vmem:[%s3 + $0x8] sm:$0xff]
    %v45 = vld [vmem:[%s3 + $0x10] sm:$0xff]
    %v46 = vld [vmem:[%s3 + $0x18] sm:$0xff]
    %v47 = vld [vmem:[%s3 + $0x20] sm:$0xff]
    %v48 = vld [vmem:[%s3 + $0x28] sm:$0xff]
    %v49 = vld [vmem:[%s3 + $0x30] sm:$0xff]
    %v50 = vld [vmem:[%s3 + $0x38] sm:$0xff]
    %vm51 = vcmask 261120
    %v53 = vsel %vm51, %v39, 0
    %v56 = vsel %vm51, %v40, 0
    %v59 = vsel %vm51, %v41, 0
    %v62 = vsel %vm51, %v42, 0
    %64 = vmatpush.msra.mxu0 0.0
    %65 = vmatpush.msra.mxu0 0.0
    %66 = vmatpush.msra.mxu0 0.0
    %67 = vmatpush.msra.mxu0 0.0
    %68 = vmatpush.msra.mxu0 0.0
    %69 = vmatpush.msra.mxu0 0.0
    %70 = vmatpush.msra.mxu0 0.0
    %71 = vmatpush.msra.mxu0 0.0
    %72 = vmatpush.msra.mxu0 0.0
    %73 = vmatpush.msra.mxu0 0.0
    %74 = vmatpush.msra.mxu0 0.0
    %75 = vmatpush.msra.mxu0 0.0
    %76 = vmatpush.msra.mxu0 %v49
    %77 = vmatpush.msra.mxu0 %v47
    %78 = vmatpush.msra.mxu0 %v45
    %79 = vmatpush.msra.mxu0 %v43
    %80 = vmatmul.f32.gmra.mxu0 %v53
    %v81 = vpop.f32.mrf.mxu0
    %v82 = vadd.f32 0.0, %v81
    %83 = vmatmul.f32.gmra.mxu0 %v56
    %v84 = vpop.f32.mrf.mxu0
    %v85 = vadd.f32 0.0, %v84
    %86 = vmatmul.f32.gmra.mxu0 %v59
    %v87 = vpop.f32.mrf.mxu0
    %v88 = vadd.f32 0.0, %v87
    %89 = vmatmul.f32.gmra.mxu0 %v62
    %v90 = vpop.f32.mrf.mxu0
    %v91 = vadd.f32 0.0, %v90
    %92 = vdwg.mxu0
    %93 = vmatpush.msra.mxu0 0.0
    %94 = vmatpush.msra.mxu0 0.0
    %95 = vmatpush.msra.mxu0 0.0
    %96 = vmatpush.msra.mxu0 0.0
    %97 = vmatpush.msra.mxu0 0.0
    %98 = vmatpush.msra.mxu0 0.0
    %99 = vmatpush.msra.mxu0 0.0
    %100 = vmatpush.msra.mxu0 0.0
    %101 = vmatpush.msra.mxu0 0.0
    %102 = vmatpush.msra.mxu0 0.0
    %103 = vmatpush.msra.mxu0 0.0
    %104 = vmatpush.msra.mxu0 0.0
    %105 = vmatpush.msra.mxu0 %v50
    %106 = vmatpush.msra.mxu0 %v48
    %107 = vmatpush.msra.mxu0 %v46
    %108 = vmatpush.msra.mxu0 %v44
    %109 = vmatmul.f32.gmra.mxu0 %v53
    %v110 = vpop.f32.mrf.mxu0
    %v111 = vadd.f32 0.0, %v110
    %112 = vmatmul.f32.gmra.mxu0 %v56
    %v113 = vpop.f32.mrf.mxu0
    %v114 = vadd.f32 0.0, %v113
    %115 = vmatmul.f32.gmra.mxu0 %v59
    %v116 = vpop.f32.mrf.mxu0
    %v117 = vadd.f32 0.0, %v116
    %118 = vmatmul.f32.gmra.mxu0 %v62
    %v119 = vpop.f32.mrf.mxu0
    %v120 = vadd.f32 0.0, %v119
    %121 = vdwg.mxu0
    %v122 = vld [vmem:[%s4] sm:$0xff]
    %v123 = vld [vmem:[%s4 + $0x8] sm:$0xff]
    %v124 = vld [vmem:[%s4 + $0x10] sm:$0xff]
    %v125 = vld [vmem:[%s4 + $0x18] sm:$0xff]
    %v126 = vld [vmem:[%s4 + $0x20] sm:$0xff]
    %v127 = vld [vmem:[%s4 + $0x28] sm:$0xff]
    %v128 = vld [vmem:[%s4 + $0x30] sm:$0xff]
    %v129 = vld [vmem:[%s4 + $0x38] sm:$0xff]
    %v130 = vld [vmem:[%s4 + $0x40] sm:$0xff]
    %v131 = vld [vmem:[%s4 + $0x48] sm:$0xff]
    %v132 = vld [vmem:[%s4 + $0x50] sm:$0xff]
    %v133 = vld [vmem:[%s4 + $0x58] sm:$0xff]
    %v134 = vld [vmem:[%s4 + $0x60] sm:$0xff]
    %v135 = vld [vmem:[%s4 + $0x68] sm:$0xff]
    %v136 = vld [vmem:[%s4 + $0x70] sm:$0xff]
    %v137 = vld [vmem:[%s4 + $0x78] sm:$0xff]
    %v138 = vld [vmem:[%s1] sm:$0xf]
    %v139 = vld [vmem:[%s2] sm:$0xf]
    %v140 = vld [vmem:[%s5] sm:$0xf]
    %v141 = vld [vmem:[%s6] sm:$0xf]
    %vm142 = vcmask 523264
    %v144 = vsel %vm142, %v140, 0
    %146 = vmatpush.msra.mxu0 0.0
    %147 = vmatpush.msra.mxu0 0.0
    %148 = vmatpush.msra.mxu0 0.0
    %149 = vmatpush.msra.mxu0 0.0
    %150 = vmatpush.msra.mxu0 0.0
    %151 = vmatpush.msra.mxu0 0.0
    %152 = vmatpush.msra.mxu0 0.0
    %153 = vmatpush.msra.mxu0 0.0
    %154 = vmatpush.msra.mxu0 %v136
    %155 = vmatpush.msra.mxu0 %v134
    %156 = vmatpush.msra.mxu0 %v132
    %157 = vmatpush.msra.mxu0 %v130
    %158 = vmatpush.msra.mxu0 %v128
    %159 = vmatpush.msra.mxu0 %v126
    %160 = vmatpush.msra.mxu0 %v124
    %161 = vmatpush.msra.mxu0 %v122
    %162 = vmatmul.f32.gmra.mxu0 %v144
    %v163 = vpop.f32.mrf.mxu0
    %v164 = vadd.f32 0.0, %v163
    %165 = vdwg.mxu0
    %166 = vmatpush.msra.mxu0 0.0
    %167 = vmatpush.msra.mxu0 0.0
    %168 = vmatpush.msra.mxu0 0.0
    %169 = vmatpush.msra.mxu0 0.0
    %170 = vmatpush.msra.mxu0 0.0
    %171 = vmatpush.msra.mxu0 0.0
    %172 = vmatpush.msra.mxu0 0.0
    %173 = vmatpush.msra.mxu0 0.0
    %174 = vmatpush.msra.mxu0 %v137
    %175 = vmatpush.msra.mxu0 %v135
    %176 = vmatpush.msra.mxu0 %v133
    %177 = vmatpush.msra.mxu0 %v131
    %178 = vmatpush.msra.mxu0 %v129
    %179 = vmatpush.msra.mxu0 %v127
    %180 = vmatpush.msra.mxu0 %v125
    %181 = vmatpush.msra.mxu0 %v123
    %182 = vmatmul.f32.gmra.mxu0 %v144
    %v183 = vpop.f32.mrf.mxu0
    %v184 = vadd.f32 0.0, %v183
    %185 = vdwg.mxu0
    %v186 = vadd.f32 %v82, %v164
    %v188 = vrot.slane %v184, 4
    %v190 = vadd.f32 %v120, %v188
    %v191 = vxor.u32 %v186, 2147483648
    %v192 = vmul.f32 %v191, 1.442695
    %v193 = vpow.pop %v192
    %v194 = vadd.f32 %v193, 1.0
    %v195 = vrcp.pop %v194
    %v196 = vmul.f32 %v194, %v195
    %v197 = vsub.f32 1.0, %v196
    %v198 = vmul.f32 %v195, %v197
    %v199 = vadd.f32 %v195, %v198
    %vm200 = vweird.f32 %v194
    %vm201 = vweird.f32 %v195
    %vm202 = vmor %vm200, %vm201
    %v203 = vsel %vm202, %v195, %v199
    %v204 = vand.u32 2147483647, %v194
    %vm205 = vcmp.eq.f32.partialorder %v204, 8.507059e+37
    %v206 = vand.u32 %v194, 2147483648
    %v207 = vor.u32 1.1754944e-38, %v206
    %v208 = vsel %vm205, %v207, %v203
    %v209 = vmul.f32 1.0, %v208
    %v210 = vtanh.pop %v186
    %v211 = vxor.u32 %v190, 2147483648
    %v212 = vmul.f32 %v211, 1.442695
    %v213 = vpow.pop %v212
    %v214 = vadd.f32 %v213, 1.0
    %v215 = vrcp.pop %v214
    %v216 = vmul.f32 %v214, %v215
    %v217 = vsub.f32 1.0, %v216
    %v218 = vmul.f32 %v215, %v217
    %v219 = vadd.f32 %v215, %v218
    %vm220 = vweird.f32 %v214
    %vm221 = vweird.f32 %v215
    %vm222 = vmor %vm220, %vm221
    %v223 = vsel %vm222, %v215, %v219
    %v224 = vand.u32 2147483647, %v214
    %vm225 = vcmp.eq.f32.partialorder %v224, 8.507059e+37
    %v226 = vand.u32 %v214, 2147483648
    %v227 = vor.u32 1.1754944e-38, %v226
    %v228 = vsel %vm225, %v227, %v223
    %v229 = vmul.f32 1.0, %v228
    %v230 = vtanh.pop %v190
    %232 = vrot.lane.b32.xlu0 %v141, 32
    %v233 = vpop.permute.xlu0 %232
    %v235 = vmul.f32 %v209, %v233
    %237 = vrot.lane.b32.xlu0 %v210, 32
    %v238 = vpop.permute.xlu0 %237
    %v240 = vmul.f32 %v209, %v238
    %242 = vrot.lane.b32.xlu0 %v240, 32
    %v243 = vpop.permute.xlu0 %242
    %v245 = vadd.f32 %v235, %v243
    %v246 = vtanh.pop %v245
    %248 = vrot.lane.b32.xlu0 %v246, 32
    %v249 = vpop.permute.xlu0 %248
    %v251 = vmul.f32 %v209, %v249
    %v252 = vrot.slane %v141, 4
    %v254 = vmul.f32 %v229, %v252
    %256 = vrot.lane.b32.xlu0 %v230, 32
    %v257 = vpop.permute.xlu0 %256
    %v259 = vmul.f32 %v229, %v257
    %261 = vrot.lane.b32.xlu0 %v259, 32
    %v262 = vpop.permute.xlu0 %261
    %v264 = vadd.f32 %v254, %v262
    %v265 = vtanh.pop %v264
    %267 = vrot.lane.b32.xlu0 %v265, 32
    %v268 = vpop.permute.xlu0 %267
    %v270 = vmul.f32 %v229, %v268
    %vm271 = vcmp.gt.s32.totalorder %v138, 0
    %vm272 = vcmp.gt.s32.totalorder %v138, 7
    %v273 = vsel %vm271, 1, 0
    %274 = vset.pattern.permute.xlu0 0
    %275 = vperm.xlu0 %274, %v273
    %v276 = vpop.permute.xlu0 %275
    %vm277 = vcmp.eq.s32.totalorder %v276, 1
    %278 = vrot.lane.b32.xlu0 %v140, 64
    %v279 = vpop.permute.xlu0 %278
    %v281 = vsel %vm277, %v251, %v279
    %v282 = vsel %vm277, %v245, %v233
    %v283 = vsel %vm272, 1, 0
    %284 = vset.pattern.permute.xlu0 0
    %285 = vperm.xlu0 %284, %v283
    %v286 = vpop.permute.xlu0 %285
    %vm287 = vcmp.eq.s32.totalorder %v286, 1
    %v289 = vrot.slane %v270, 4
    %290 = vrot.lane.b32.xlu0 %v289, 64
    %v291 = vpop.permute.xlu0 %290
    %293 = vrot.lane.b32.xlu0 %v140, 96
    %v294 = vpop.permute.xlu0 %293
    %v296 = vsel %vm287, %v291, %v294
    %v298 = vrot.slane %v264, 4
    %299 = vrot.lane.b32.xlu0 %v298, 96
    %v300 = vpop.permute.xlu0 %299
    %302 = vrot.lane.b32.xlu0 %v141, 96
    %v303 = vpop.permute.xlu0 %302
    %v305 = vsel %vm287, %v300, %v303
    %vm306 = vcmp.eq.s32.totalorder %v139, 0
    %vm307 = vmand %vm306, %vm271
    %v308 = vsel %vm307, 1, 0
    %309 = vset.pattern.permute.xlu0 0
    %310 = vperm.xlu0 %309, %v308
    %v311 = vpop.permute.xlu0 %310
    %vm312 = vcmp.eq.s32.totalorder %v311, 1
    %v313 = vsel %vm312, %v251, 0.0
    %vm314 = vcmp.eq.s32.totalorder %v139, 7
    %vm315 = vmand %vm314, %vm272
    %v316 = vsel %vm315, 1, 0
    %317 = vset.pattern.permute.xlu0 0
    %318 = vperm.xlu0 %317, %v316
    %v319 = vpop.permute.xlu0 %318
    %vm320 = vcmp.eq.s32.totalorder %v319, 1
    %v321 = vsel %vm320, %v291, 0.0
    %323 = vrot.lane.b32.xlu0 %v281, 64
    %v324 = vpop.permute.xlu0 %323
    %327 = vrot.lane.b32.xlu0 %v296, 32
    %v328 = vpop.permute.xlu0 %327
    %v330 = vsel %vm51, %v324, %v328
    %v332 = vsel %vm142, %v330, 0
    %334 = vmatpush.msra.mxu0 0.0
    %335 = vmatpush.msra.mxu0 0.0
    %336 = vmatpush.msra.mxu0 0.0
    %337 = vmatpush.msra.mxu0 0.0
    %338 = vmatpush.msra.mxu0 0.0
    %339 = vmatpush.msra.mxu0 0.0
    %340 = vmatpush.msra.mxu0 0.0
    %341 = vmatpush.msra.mxu0 0.0
    %342 = vmatpush.msra.mxu0 %v136
    %343 = vmatpush.msra.mxu0 %v134
    %344 = vmatpush.msra.mxu0 %v132
    %345 = vmatpush.msra.mxu0 %v130
    %346 = vmatpush.msra.mxu0 %v128
    %347 = vmatpush.msra.mxu0 %v126
    %348 = vmatpush.msra.mxu0 %v124
    %349 = vmatpush.msra.mxu0 %v122
    %350 = vmatmul.f32.gmra.mxu0 %v332
    %v351 = vpop.f32.mrf.mxu0
    %v352 = vadd.f32 0.0, %v351
    %353 = vdwg.mxu0
    %354 = vmatpush.msra.mxu0 0.0
    %355 = vmatpush.msra.mxu0 0.0
    %356 = vmatpush.msra.mxu0 0.0
    %357 = vmatpush.msra.mxu0 0.0
    %358 = vmatpush.msra.mxu0 0.0
    %359 = vmatpush.msra.mxu0 0.0
    %360 = vmatpush.msra.mxu0 0.0
    %361 = vmatpush.msra.mxu0 0.0
    %362 = vmatpush.msra.mxu0 %v137
    %363 = vmatpush.msra.mxu0 %v135
    %364 = vmatpush.msra.mxu0 %v133
    %365 = vmatpush.msra.mxu0 %v131
    %366 = vmatpush.msra.mxu0 %v129
    %367 = vmatpush.msra.mxu0 %v127
    %368 = vmatpush.msra.mxu0 %v125
    %369 = vmatpush.msra.mxu0 %v123
    %370 = vmatmul.f32.gmra.mxu0 %v332
    %v371 = vpop.f32.mrf.mxu0
    %v372 = vadd.f32 0.0, %v371
    %373 = vdwg.mxu0
    %v375 = vrot.slane %v352, 4
    %v377 = vadd.f32 %v82, %v375
    %v378 = vadd.f32 %v120, %v372
    %v379 = vxor.u32 %v377, 2147483648
    %v380 = vmul.f32 %v379, 1.442695
    %v381 = vpow.pop %v380
    %v382 = vadd.f32 %v381, 1.0
    %v383 = vrcp.pop %v382
    %v384 = vmul.f32 %v382, %v383
    %v385 = vsub.f32 1.0, %v384
    %v386 = vmul.f32 %v383, %v385
    %v387 = vadd.f32 %v383, %v386
    %vm388 = vweird.f32 %v382
    %vm389 = vweird.f32 %v383
    %vm390 = vmor %vm388, %vm389
    %v391 = vsel %vm390, %v383, %v387
    %v392 = vand.u32 2147483647, %v382
    %vm393 = vcmp.eq.f32.partialorder %v392, 8.507059e+37
    %v394 = vand.u32 %v382, 2147483648
    %v395 = vor.u32 1.1754944e-38, %v394
    %v396 = vsel %vm393, %v395, %v391
    %v397 = vmul.f32 1.0, %v396
    %v398 = vtanh.pop %v377
    %v399 = vxor.u32 %v378, 2147483648
    %v400 = vmul.f32 %v399, 1.442695
    %v401 = vpow.pop %v400
    %v402 = vadd.f32 %v401, 1.0
    %v403 = vrcp.pop %v402
    %v404 = vmul.f32 %v402, %v403
    %v405 = vsub.f32 1.0, %v404
    %v406 = vmul.f32 %v403, %v405
    %v407 = vadd.f32 %v403, %v406
    %vm408 = vweird.f32 %v402
    %vm409 = vweird.f32 %v403
    %vm410 = vmor %vm408, %vm409
    %v411 = vsel %vm410, %v403, %v407
    %v412 = vand.u32 2147483647, %v402
    %vm413 = vcmp.eq.f32.partialorder %v412, 8.507059e+37
    %v414 = vand.u32 %v402, 2147483648
    %v415 = vor.u32 1.1754944e-38, %v414
    %v416 = vsel %vm413, %v415, %v411
    %v417 = vmul.f32 1.0, %v416
    %v418 = vtanh.pop %v378
    %v420 = vrot.slane %v282, 4
    %v422 = vmul.f32 %v397, %v420
    %424 = vrot.lane.b32.xlu0 %v398, 32
    %v425 = vpop.permute.xlu0 %424
    %v427 = vmul.f32 %v397, %v425
    %429 = vrot.lane.b32.xlu0 %v427, 32
    %v430 = vpop.permute.xlu0 %429
    %v432 = vadd.f32 %v422, %v430
    %v433 = vtanh.pop %v432
    %435 = vrot.lane.b32.xlu0 %v433, 32
    %v436 = vpop.permute.xlu0 %435
    %v438 = vmul.f32 %v397, %v436
    %440 = vrot.lane.b32.xlu0 %v305, 32
    %v441 = vpop.permute.xlu0 %440
    %v443 = vmul.f32 %v417, %v441
    %445 = vrot.lane.b32.xlu0 %v418, 32
    %v446 = vpop.permute.xlu0 %445
    %v448 = vmul.f32 %v417, %v446
    %450 = vrot.lane.b32.xlu0 %v448, 32
    %v451 = vpop.permute.xlu0 %450
    %v453 = vadd.f32 %v443, %v451
    %v454 = vtanh.pop %v453
    %456 = vrot.lane.b32.xlu0 %v454, 32
    %v457 = vpop.permute.xlu0 %456
    %v459 = vmul.f32 %v417, %v457
    %vm460 = vcmp.gt.s32.totalorder %v138, 1
    %vm461 = vcmp.gt.s32.totalorder %v138, 6
    %v462 = vsel %vm460, 1, 0
    %463 = vset.pattern.permute.xlu0 0
    %464 = vperm.xlu0 %463, %v462
    %v465 = vpop.permute.xlu0 %464
    %vm466 = vcmp.eq.s32.totalorder %v465, 1
    %v468 = vrot.slane %v438, 4
    %469 = vrot.lane.b32.xlu0 %v468, 64
    %v470 = vpop.permute.xlu0 %469
    %v472 = vsel %vm466, %v470, %v324
    %v474 = vrot.slane %v432, 4
    %475 = vrot.lane.b32.xlu0 %v474, 96
    %v476 = vpop.permute.xlu0 %475
    %478 = vrot.lane.b32.xlu0 %v282, 96
    %v479 = vpop.permute.xlu0 %478
    %v481 = vsel %vm466, %v476, %v479
    %v482 = vsel %vm461, 1, 0
    %483 = vset.pattern.permute.xlu0 0
    %484 = vperm.xlu0 %483, %v482
    %v485 = vpop.permute.xlu0 %484
    %vm486 = vcmp.eq.s32.totalorder %v485, 1
    %487 = vrot.lane.b32.xlu0 %v296, 64
    %v488 = vpop.permute.xlu0 %487
    %v490 = vsel %vm486, %v459, %v488
    %v491 = vsel %vm486, %v453, %v441
    %vm492 = vcmp.eq.s32.totalorder %v139, 1
    %vm493 = vmand %vm492, %vm460
    %v494 = vsel %vm493, 1, 0
    %495 = vset.pattern.permute.xlu0 0
    %496 = vperm.xlu0 %495, %v494
    %v497 = vpop.permute.xlu0 %496
    %vm498 = vcmp.eq.s32.totalorder %v497, 1
    %500 = vrot.lane.b32.xlu0 %v313, 64
    %v501 = vpop.permute.xlu0 %500
    %v503 = vsel %vm498, %v470, %v501
    %vm504 = vcmp.eq.s32.totalorder %v139, 6
    %vm505 = vmand %vm504, %vm461
    %v506 = vsel %vm505, 1, 0
    %507 = vset.pattern.permute.xlu0 0
    %508 = vperm.xlu0 %507, %v506
    %v509 = vpop.permute.xlu0 %508
    %vm510 = vcmp.eq.s32.totalorder %v509, 1
    %512 = vrot.lane.b32.xlu0 %v321, 64
    %v513 = vpop.permute.xlu0 %512
    %v515 = vsel %vm510, %v459, %v513
    %517 = vrot.lane.b32.xlu0 %v490, 96
    %v518 = vpop.permute.xlu0 %517
    %v520 = vsel %vm51, %v472, %v518
    %v522 = vsel %vm142, %v520, 0
    %524 = vmatpush.msra.mxu0 0.0
    %525 = vmatpush.msra.mxu0 0.0
    %526 = vmatpush.msra.mxu0 0.0
    %527 = vmatpush.msra.mxu0 0.0
    %528 = vmatpush.msra.mxu0 0.0
    %529 = vmatpush.msra.mxu0 0.0
    %530 = vmatpush.msra.mxu0 0.0
    %531 = vmatpush.msra.mxu0 0.0
    %532 = vmatpush.msra.mxu0 %v136
    %533 = vmatpush.msra.mxu0 %v134
    %534 = vmatpush.msra.mxu0 %v132
    %535 = vmatpush.msra.mxu0 %v130
    %536 = vmatpush.msra.mxu0 %v128
    %537 = vmatpush.msra.mxu0 %v126
    %538 = vmatpush.msra.mxu0 %v124
    %539 = vmatpush.msra.mxu0 %v122
    %540 = vmatmul.f32.gmra.mxu0 %v522
    %v541 = vpop.f32.mrf.mxu0
    %v542 = vadd.f32 0.0, %v541
    %543 = vdwg.mxu0
    %544 = vmatpush.msra.mxu0 0.0
    %545 = vmatpush.msra.mxu0 0.0
    %546 = vmatpush.msra.mxu0 0.0
    %547 = vmatpush.msra.mxu0 0.0
    %548 = vmatpush.msra.mxu0 0.0
    %549 = vmatpush.msra.mxu0 0.0
    %550 = vmatpush.msra.mxu0 0.0
    %551 = vmatpush.msra.mxu0 0.0
    %552 = vmatpush.msra.mxu0 %v137
    %553 = vmatpush.msra.mxu0 %v135
    %554 = vmatpush.msra.mxu0 %v133
    %555 = vmatpush.msra.mxu0 %v131
    %556 = vmatpush.msra.mxu0 %v129
    %557 = vmatpush.msra.mxu0 %v127
    %558 = vmatpush.msra.mxu0 %v125
    %559 = vmatpush.msra.mxu0 %v123
    %560 = vmatmul.f32.gmra.mxu0 %v522
    %v561 = vpop.f32.mrf.mxu0
    %v562 = vadd.f32 0.0, %v561
    %563 = vdwg.mxu0
    %v564 = vadd.f32 %v85, %v542
    %v566 = vrot.slane %v562, 4
    %v568 = vadd.f32 %v117, %v566
    %v569 = vxor.u32 %v564, 2147483648
    %v570 = vmul.f32 %v569, 1.442695
    %v571 = vpow.pop %v570
    %v572 = vadd.f32 %v571, 1.0
    %v573 = vrcp.pop %v572
    %v574 = vmul.f32 %v572, %v573
    %v575 = vsub.f32 1.0, %v574
    %v576 = vmul.f32 %v573, %v575
    %v577 = vadd.f32 %v573, %v576
    %vm578 = vweird.f32 %v572
    %vm579 = vweird.f32 %v573
    %vm580 = vmor %vm578, %vm579
    %v581 = vsel %vm580, %v573, %v577
    %v582 = vand.u32 2147483647, %v572
    %vm583 = vcmp.eq.f32.partialorder %v582, 8.507059e+37
    %v584 = vand.u32 %v572, 2147483648
    %v585 = vor.u32 1.1754944e-38, %v584
    %v586 = vsel %vm583, %v585, %v581
    %v587 = vmul.f32 1.0, %v586
    %v588 = vtanh.pop %v564
    %v589 = vxor.u32 %v568, 2147483648
    %v590 = vmul.f32 %v589, 1.442695
    %v591 = vpow.pop %v590
    %v592 = vadd.f32 %v591, 1.0
    %v593 = vrcp.pop %v592
    %v594 = vmul.f32 %v592, %v593
    %v595 = vsub.f32 1.0, %v594
    %v596 = vmul.f32 %v593, %v595
    %v597 = vadd.f32 %v593, %v596
    %vm598 = vweird.f32 %v592
    %vm599 = vweird.f32 %v593
    %vm600 = vmor %vm598, %vm599
    %v601 = vsel %vm600, %v593, %v597
    %v602 = vand.u32 2147483647, %v592
    %vm603 = vcmp.eq.f32.partialorder %v602, 8.507059e+37
    %v604 = vand.u32 %v592, 2147483648
    %v605 = vor.u32 1.1754944e-38, %v604
    %v606 = vsel %vm603, %v605, %v601
    %v607 = vmul.f32 1.0, %v606
    %v608 = vtanh.pop %v568
    %610 = vrot.lane.b32.xlu0 %v481, 32
    %v611 = vpop.permute.xlu0 %610
    %v613 = vmul.f32 %v587, %v611
    %615 = vrot.lane.b32.xlu0 %v588, 32
    %v616 = vpop.permute.xlu0 %615
    %v618 = vmul.f32 %v587, %v616
    %620 = vrot.lane.b32.xlu0 %v618, 32
    %v621 = vpop.permute.xlu0 %620
    %v623 = vadd.f32 %v613, %v621
    %v624 = vtanh.pop %v623
    %626 = vrot.lane.b32.xlu0 %v624, 32
    %v627 = vpop.permute.xlu0 %626
    %v629 = vmul.f32 %v587, %v627
    %v631 = vrot.slane %v491, 4
    %v633 = vmul.f32 %v607, %v631
    %635 = vrot.lane.b32.xlu0 %v608, 32
    %v636 = vpop.permute.xlu0 %635
    %v638 = vmul.f32 %v607, %v636
    %640 = vrot.lane.b32.xlu0 %v638, 32
    %v641 = vpop.permute.xlu0 %640
    %v643 = vadd.f32 %v633, %v641
    %v644 = vtanh.pop %v643
    %646 = vrot.lane.b32.xlu0 %v644, 32
    %v647 = vpop.permute.xlu0 %646
    %v649 = vmul.f32 %v607, %v647
    %vm650 = vcmp.gt.s32.totalorder %v138, 2
    %vm651 = vcmp.gt.s32.totalorder %v138, 5
    %v652 = vsel %vm650, 1, 0
    %653 = vset.pattern.permute.xlu0 0
    %654 = vperm.xlu0 %653, %v652
    %v655 = vpop.permute.xlu0 %654
    %vm656 = vcmp.eq.s32.totalorder %v655, 1
    %658 = vrot.lane.b32.xlu0 %v472, 64
    %v659 = vpop.permute.xlu0 %658
    %v661 = vsel %vm656, %v629, %v659
    %v662 = vsel %vm656, %v623, %v611
    %v663 = vsel %vm651, 1, 0
    %664 = vset.pattern.permute.xlu0 0
    %665 = vperm.xlu0 %664, %v663
    %v666 = vpop.permute.xlu0 %665
    %vm667 = vcmp.eq.s32.totalorder %v666, 1
    %v669 = vrot.slane %v649, 4
    %670 = vrot.lane.b32.xlu0 %v669, 64
    %v671 = vpop.permute.xlu0 %670
    %673 = vrot.lane.b32.xlu0 %v490, 64
    %v674 = vpop.permute.xlu0 %673
    %v676 = vsel %vm667, %v671, %v674
    %v678 = vrot.slane %v643, 4
    %679 = vrot.lane.b32.xlu0 %v678, 96
    %v680 = vpop.permute.xlu0 %679
    %682 = vrot.lane.b32.xlu0 %v491, 96
    %v683 = vpop.permute.xlu0 %682
    %v685 = vsel %vm667, %v680, %v683
    %vm686 = vcmp.eq.s32.totalorder %v139, 2
    %vm687 = vmand %vm686, %vm650
    %v688 = vsel %vm687, 1, 0
    %689 = vset.pattern.permute.xlu0 0
    %690 = vperm.xlu0 %689, %v688
    %v691 = vpop.permute.xlu0 %690
    %vm692 = vcmp.eq.s32.totalorder %v691, 1
    %694 = vrot.lane.b32.xlu0 %v503, 64
    %v695 = vpop.permute.xlu0 %694
    %v697 = vsel %vm692, %v629, %v695
    %vm698 = vcmp.eq.s32.totalorder %v139, 5
    %vm699 = vmand %vm698, %vm651
    %v700 = vsel %vm699, 1, 0
    %701 = vset.pattern.permute.xlu0 0
    %702 = vperm.xlu0 %701, %v700
    %v703 = vpop.permute.xlu0 %702
    %vm704 = vcmp.eq.s32.totalorder %v703, 1
    %706 = vrot.lane.b32.xlu0 %v515, 64
    %v707 = vpop.permute.xlu0 %706
    %v709 = vsel %vm704, %v671, %v707
    %711 = vrot.lane.b32.xlu0 %v661, 64
    %v712 = vpop.permute.xlu0 %711
    %715 = vrot.lane.b32.xlu0 %v676, 32
    %v716 = vpop.permute.xlu0 %715
    %v718 = vsel %vm51, %v712, %v716
    %v720 = vsel %vm142, %v718, 0
    %722 = vmatpush.msra.mxu0 0.0
    %723 = vmatpush.msra.mxu0 0.0
    %724 = vmatpush.msra.mxu0 0.0
    %725 = vmatpush.msra.mxu0 0.0
    %726 = vmatpush.msra.mxu0 0.0
    %727 = vmatpush.msra.mxu0 0.0
    %728 = vmatpush.msra.mxu0 0.0
    %729 = vmatpush.msra.mxu0 0.0
    %730 = vmatpush.msra.mxu0 %v136
    %731 = vmatpush.msra.mxu0 %v134
    %732 = vmatpush.msra.mxu0 %v132
    %733 = vmatpush.msra.mxu0 %v130
    %734 = vmatpush.msra.mxu0 %v128
    %735 = vmatpush.msra.mxu0 %v126
    %736 = vmatpush.msra.mxu0 %v124
    %737 = vmatpush.msra.mxu0 %v122
    %738 = vmatmul.f32.gmra.mxu0 %v720
    %v739 = vpop.f32.mrf.mxu0
    %v740 = vadd.f32 0.0, %v739
    %741 = vdwg.mxu0
    %742 = vmatpush.msra.mxu0 0.0
    %743 = vmatpush.msra.mxu0 0.0
    %744 = vmatpush.msra.mxu0 0.0
    %745 = vmatpush.msra.mxu0 0.0
    %746 = vmatpush.msra.mxu0 0.0
    %747 = vmatpush.msra.mxu0 0.0
    %748 = vmatpush.msra.mxu0 0.0
    %749 = vmatpush.msra.mxu0 0.0
    %750 = vmatpush.msra.mxu0 %v137
    %751 = vmatpush.msra.mxu0 %v135
    %752 = vmatpush.msra.mxu0 %v133
    %753 = vmatpush.msra.mxu0 %v131
    %754 = vmatpush.msra.mxu0 %v129
    %755 = vmatpush.msra.mxu0 %v127
    %756 = vmatpush.msra.mxu0 %v125
    %757 = vmatpush.msra.mxu0 %v123
    %758 = vmatmul.f32.gmra.mxu0 %v720
    %v759 = vpop.f32.mrf.mxu0
    %v760 = vadd.f32 0.0, %v759
    %761 = vdwg.mxu0
    %v763 = vrot.slane %v740, 4
    %v765 = vadd.f32 %v85, %v763
    %v766 = vadd.f32 %v117, %v760
    %v767 = vxor.u32 %v765, 2147483648
    %v768 = vmul.f32 %v767, 1.442695
    %v769 = vpow.pop %v768
    %v770 = vadd.f32 %v769, 1.0
    %v771 = vrcp.pop %v770
    %v772 = vmul.f32 %v770, %v771
    %v773 = vsub.f32 1.0, %v772
    %v774 = vmul.f32 %v771, %v773
    %v775 = vadd.f32 %v771, %v774
    %vm776 = vweird.f32 %v770
    %vm777 = vweird.f32 %v771
    %vm778 = vmor %vm776, %vm777
    %v779 = vsel %vm778, %v771, %v775
    %v780 = vand.u32 2147483647, %v770
    %vm781 = vcmp.eq.f32.partialorder %v780, 8.507059e+37
    %v782 = vand.u32 %v770, 2147483648
    %v783 = vor.u32 1.1754944e-38, %v782
    %v784 = vsel %vm781, %v783, %v779
    %v785 = vmul.f32 1.0, %v784
    %v786 = vtanh.pop %v765
    %v787 = vxor.u32 %v766, 2147483648
    %v788 = vmul.f32 %v787, 1.442695
    %v789 = vpow.pop %v788
    %v790 = vadd.f32 %v789, 1.0
    %v791 = vrcp.pop %v790
    %v792 = vmul.f32 %v790, %v791
    %v793 = vsub.f32 1.0, %v792
    %v794 = vmul.f32 %v791, %v793
    %v795 = vadd.f32 %v791, %v794
    %vm796 = vweird.f32 %v790
    %vm797 = vweird.f32 %v791
    %vm798 = vmor %vm796, %vm797
    %v799 = vsel %vm798, %v791, %v795
    %v800 = vand.u32 2147483647, %v790
    %vm801 = vcmp.eq.f32.partialorder %v800, 8.507059e+37
    %v802 = vand.u32 %v790, 2147483648
    %v803 = vor.u32 1.1754944e-38, %v802
    %v804 = vsel %vm801, %v803, %v799
    %v805 = vmul.f32 1.0, %v804
    %v806 = vtanh.pop %v766
    %v808 = vrot.slane %v662, 4
    %v810 = vmul.f32 %v785, %v808
    %812 = vrot.lane.b32.xlu0 %v786, 32
    %v813 = vpop.permute.xlu0 %812
    %v815 = vmul.f32 %v785, %v813
    %817 = vrot.lane.b32.xlu0 %v815, 32
    %v818 = vpop.permute.xlu0 %817
    %v820 = vadd.f32 %v810, %v818
    %v821 = vtanh.pop %v820
    %823 = vrot.lane.b32.xlu0 %v821, 32
    %v824 = vpop.permute.xlu0 %823
    %v826 = vmul.f32 %v785, %v824
    %828 = vrot.lane.b32.xlu0 %v685, 32
    %v829 = vpop.permute.xlu0 %828
    %v831 = vmul.f32 %v805, %v829
    %833 = vrot.lane.b32.xlu0 %v806, 32
    %v834 = vpop.permute.xlu0 %833
    %v836 = vmul.f32 %v805, %v834
    %838 = vrot.lane.b32.xlu0 %v836, 32
    %v839 = vpop.permute.xlu0 %838
    %v841 = vadd.f32 %v831, %v839
    %v842 = vtanh.pop %v841
    %844 = vrot.lane.b32.xlu0 %v842, 32
    %v845 = vpop.permute.xlu0 %844
    %v847 = vmul.f32 %v805, %v845
    %vm848 = vcmp.gt.s32.totalorder %v138, 3
    %vm849 = vcmp.gt.s32.totalorder %v138, 4
    %v850 = vsel %vm848, 1, 0
    %851 = vset.pattern.permute.xlu0 0
    %852 = vperm.xlu0 %851, %v850
    %v853 = vpop.permute.xlu0 %852
    %vm854 = vcmp.eq.s32.totalorder %v853, 1
    %v856 = vrot.slane %v826, 4
    %857 = vrot.lane.b32.xlu0 %v856, 64
    %v858 = vpop.permute.xlu0 %857
    %v860 = vsel %vm854, %v858, %v712
    %v862 = vrot.slane %v820, 4
    %863 = vrot.lane.b32.xlu0 %v862, 96
    %v864 = vpop.permute.xlu0 %863
    %866 = vrot.lane.b32.xlu0 %v662, 96
    %v867 = vpop.permute.xlu0 %866
    %v869 = vsel %vm854, %v864, %v867
    %v870 = vsel %vm849, 1, 0
    %871 = vset.pattern.permute.xlu0 0
    %872 = vperm.xlu0 %871, %v870
    %v873 = vpop.permute.xlu0 %872
    %vm874 = vcmp.eq.s32.totalorder %v873, 1
    %875 = vrot.lane.b32.xlu0 %v676, 64
    %v876 = vpop.permute.xlu0 %875
    %v878 = vsel %vm874, %v847, %v876
    %v879 = vsel %vm874, %v841, %v829
    %vm880 = vcmp.eq.s32.totalorder %v139, 3
    %vm881 = vmand %vm880, %vm848
    %v882 = vsel %vm881, 1, 0
    %883 = vset.pattern.permute.xlu0 0
    %884 = vperm.xlu0 %883, %v882
    %v885 = vpop.permute.xlu0 %884
    %vm886 = vcmp.eq.s32.totalorder %v885, 1
    %888 = vrot.lane.b32.xlu0 %v697, 64
    %v889 = vpop.permute.xlu0 %888
    %v891 = vsel %vm886, %v858, %v889
    %vm892 = vcmp.eq.s32.totalorder %v139, 4
    %vm893 = vmand %vm892, %vm849
    %v894 = vsel %vm893, 1, 0
    %895 = vset.pattern.permute.xlu0 0
    %896 = vperm.xlu0 %895, %v894
    %v897 = vpop.permute.xlu0 %896
    %vm898 = vcmp.eq.s32.totalorder %v897, 1
    %900 = vrot.lane.b32.xlu0 %v709, 64
    %v901 = vpop.permute.xlu0 %900
    %v903 = vsel %vm898, %v847, %v901
    %905 = vrot.lane.b32.xlu0 %v878, 96
    %v906 = vpop.permute.xlu0 %905
    %v908 = vsel %vm51, %v860, %v906
    %v910 = vsel %vm142, %v908, 0
    %912 = vmatpush.msra.mxu0 0.0
    %913 = vmatpush.msra.mxu0 0.0
    %914 = vmatpush.msra.mxu0 0.0
    %915 = vmatpush.msra.mxu0 0.0
    %916 = vmatpush.msra.mxu0 0.0
    %917 = vmatpush.msra.mxu0 0.0
    %918 = vmatpush.msra.mxu0 0.0
    %919 = vmatpush.msra.mxu0 0.0
    %920 = vmatpush.msra.mxu0 %v136
    %921 = vmatpush.msra.mxu0 %v134
    %922 = vmatpush.msra.mxu0 %v132
    %923 = vmatpush.msra.mxu0 %v130
    %924 = vmatpush.msra.mxu0 %v128
    %925 = vmatpush.msra.mxu0 %v126
    %926 = vmatpush.msra.mxu0 %v124
    %927 = vmatpush.msra.mxu0 %v122
    %928 = vmatmul.f32.gmra.mxu0 %v910
    %v929 = vpop.f32.mrf.mxu0
    %v930 = vadd.f32 0.0, %v929
    %931 = vdwg.mxu0
    %932 = vmatpush.msra.mxu0 0.0
    %933 = vmatpush.msra.mxu0 0.0
    %934 = vmatpush.msra.mxu0 0.0
    %935 = vmatpush.msra.mxu0 0.0
    %936 = vmatpush.msra.mxu0 0.0
    %937 = vmatpush.msra.mxu0 0.0
    %938 = vmatpush.msra.mxu0 0.0
    %939 = vmatpush.msra.mxu0 0.0
    %940 = vmatpush.msra.mxu0 %v137
    %941 = vmatpush.msra.mxu0 %v135
    %942 = vmatpush.msra.mxu0 %v133
    %943 = vmatpush.msra.mxu0 %v131
    %944 = vmatpush.msra.mxu0 %v129
    %945 = vmatpush.msra.mxu0 %v127
    %946 = vmatpush.msra.mxu0 %v125
    %947 = vmatpush.msra.mxu0 %v123
    %948 = vmatmul.f32.gmra.mxu0 %v910
    %v949 = vpop.f32.mrf.mxu0
    %v950 = vadd.f32 0.0, %v949
    %951 = vdwg.mxu0
    %v952 = vadd.f32 %v88, %v930
    %v954 = vrot.slane %v950, 4
    %v956 = vadd.f32 %v114, %v954
    %v957 = vxor.u32 %v952, 2147483648
    %v958 = vmul.f32 %v957, 1.442695
    %v959 = vpow.pop %v958
    %v960 = vadd.f32 %v959, 1.0
    %v961 = vrcp.pop %v960
    %v962 = vmul.f32 %v960, %v961
    %v963 = vsub.f32 1.0, %v962
    %v964 = vmul.f32 %v961, %v963
    %v965 = vadd.f32 %v961, %v964
    %vm966 = vweird.f32 %v960
    %vm967 = vweird.f32 %v961
    %vm968 = vmor %vm966, %vm967
    %v969 = vsel %vm968, %v961, %v965
    %v970 = vand.u32 2147483647, %v960
    %vm971 = vcmp.eq.f32.partialorder %v970, 8.507059e+37
    %v972 = vand.u32 %v960, 2147483648
    %v973 = vor.u32 1.1754944e-38, %v972
    %v974 = vsel %vm971, %v973, %v969
    %v975 = vmul.f32 1.0, %v974
    %v976 = vtanh.pop %v952
    %v977 = vxor.u32 %v956, 2147483648
    %v978 = vmul.f32 %v977, 1.442695
    %v979 = vpow.pop %v978
    %v980 = vadd.f32 %v979, 1.0
    %v981 = vrcp.pop %v980
    %v982 = vmul.f32 %v980, %v981
    %v983 = vsub.f32 1.0, %v982
    %v984 = vmul.f32 %v981, %v983
    %v985 = vadd.f32 %v981, %v984
    %vm986 = vweird.f32 %v980
    %vm987 = vweird.f32 %v981
    %vm988 = vmor %vm986, %vm987
    %v989 = vsel %vm988, %v981, %v985
    %v990 = vand.u32 2147483647, %v980
    %vm991 = vcmp.eq.f32.partialorder %v990, 8.507059e+37
    %v992 = vand.u32 %v980, 2147483648
    %v993 = vor.u32 1.1754944e-38, %v992
    %v994 = vsel %vm991, %v993, %v989
    %v995 = vmul.f32 1.0, %v994
    %v996 = vtanh.pop %v956
    %998 = vrot.lane.b32.xlu0 %v869, 32
    %v999 = vpop.permute.xlu0 %998
    %v1001 = vmul.f32 %v975, %v999
    %1003 = vrot.lane.b32.xlu0 %v976, 32
    %v1004 = vpop.permute.xlu0 %1003
    %v1006 = vmul.f32 %v975, %v1004
    %1008 = vrot.lane.b32.xlu0 %v1006, 32
    %v1009 = vpop.permute.xlu0 %1008
    %v1011 = vadd.f32 %v1001, %v1009
    %v1012 = vtanh.pop %v1011
    %1014 = vrot.lane.b32.xlu0 %v1012, 32
    %v1015 = vpop.permute.xlu0 %1014
    %v1017 = vmul.f32 %v975, %v1015
    %v1019 = vrot.slane %v879, 4
    %v1021 = vmul.f32 %v995, %v1019
    %1023 = vrot.lane.b32.xlu0 %v996, 32
    %v1024 = vpop.permute.xlu0 %1023
    %v1026 = vmul.f32 %v995, %v1024
    %1028 = vrot.lane.b32.xlu0 %v1026, 32
    %v1029 = vpop.permute.xlu0 %1028
    %v1031 = vadd.f32 %v1021, %v1029
    %v1032 = vtanh.pop %v1031
    %1034 = vrot.lane.b32.xlu0 %v1032, 32
    %v1035 = vpop.permute.xlu0 %1034
    %v1037 = vmul.f32 %v995, %v1035
    %1039 = vrot.lane.b32.xlu0 %v860, 64
    %v1040 = vpop.permute.xlu0 %1039
    %v1042 = vsel %vm874, %v1017, %v1040
    %v1043 = vsel %vm874, %v1011, %v999
    %v1045 = vrot.slane %v1037, 4
    %1046 = vrot.lane.b32.xlu0 %v1045, 64
    %v1047 = vpop.permute.xlu0 %1046
    %1049 = vrot.lane.b32.xlu0 %v878, 64
    %v1050 = vpop.permute.xlu0 %1049
    %v1052 = vsel %vm854, %v1047, %v1050
    %v1054 = vrot.slane %v1031, 4
    %1055 = vrot.lane.b32.xlu0 %v1054, 96
    %v1056 = vpop.permute.xlu0 %1055
    %1058 = vrot.lane.b32.xlu0 %v879, 96
    %v1059 = vpop.permute.xlu0 %1058
    %v1061 = vsel %vm854, %v1056, %v1059
    %1063 = vrot.lane.b32.xlu0 %v891, 64
    %v1064 = vpop.permute.xlu0 %1063
    %v1066 = vsel %vm898, %v1017, %v1064
    %1068 = vrot.lane.b32.xlu0 %v903, 64
    %v1069 = vpop.permute.xlu0 %1068
    %v1071 = vsel %vm886, %v1047, %v1069
    %1073 = vrot.lane.b32.xlu0 %v1042, 64
    %v1074 = vpop.permute.xlu0 %1073
    %1077 = vrot.lane.b32.xlu0 %v1052, 32
    %v1078 = vpop.permute.xlu0 %1077
    %v1080 = vsel %vm51, %v1074, %v1078
    %v1082 = vsel %vm142, %v1080, 0
    %1084 = vmatpush.msra.mxu0 0.0
    %1085 = vmatpush.msra.mxu0 0.0
    %1086 = vmatpush.msra.mxu0 0.0
    %1087 = vmatpush.msra.mxu0 0.0
    %1088 = vmatpush.msra.mxu0 0.0
    %1089 = vmatpush.msra.mxu0 0.0
    %1090 = vmatpush.msra.mxu0 0.0
    %1091 = vmatpush.msra.mxu0 0.0
    %1092 = vmatpush.msra.mxu0 %v136
    %1093 = vmatpush.msra.mxu0 %v134
    %1094 = vmatpush.msra.mxu0 %v132
    %1095 = vmatpush.msra.mxu0 %v130
    %1096 = vmatpush.msra.mxu0 %v128
    %1097 = vmatpush.msra.mxu0 %v126
    %1098 = vmatpush.msra.mxu0 %v124
    %1099 = vmatpush.msra.mxu0 %v122
    %1100 = vmatmul.f32.gmra.mxu0 %v1082
    %v1101 = vpop.f32.mrf.mxu0
    %v1102 = vadd.f32 0.0, %v1101
    %1103 = vdwg.mxu0
    %1104 = vmatpush.msra.mxu0 0.0
    %1105 = vmatpush.msra.mxu0 0.0
    %1106 = vmatpush.msra.mxu0 0.0
    %1107 = vmatpush.msra.mxu0 0.0
    %1108 = vmatpush.msra.mxu0 0.0
    %1109 = vmatpush.msra.mxu0 0.0
    %1110 = vmatpush.msra.mxu0 0.0
    %1111 = vmatpush.msra.mxu0 0.0
    %1112 = vmatpush.msra.mxu0 %v137
    %1113 = vmatpush.msra.mxu0 %v135
    %1114 = vmatpush.msra.mxu0 %v133
    %1115 = vmatpush.msra.mxu0 %v131
    %1116 = vmatpush.msra.mxu0 %v129
    %1117 = vmatpush.msra.mxu0 %v127
    %1118 = vmatpush.msra.mxu0 %v125
    %1119 = vmatpush.msra.mxu0 %v123
    %1120 = vmatmul.f32.gmra.mxu0 %v1082
    %v1121 = vpop.f32.mrf.mxu0
    %v1122 = vadd.f32 0.0, %v1121
    %1123 = vdwg.mxu0
    %v1125 = vrot.slane %v1102, 4
    %v1127 = vadd.f32 %v88, %v1125
    %v1128 = vadd.f32 %v114, %v1122
    %v1129 = vxor.u32 %v1127, 2147483648
    %v1130 = vmul.f32 %v1129, 1.442695
    %v1131 = vpow.pop %v1130
    %v1132 = vadd.f32 %v1131, 1.0
    %v1133 = vrcp.pop %v1132
    %v1134 = vmul.f32 %v1132, %v1133
    %v1135 = vsub.f32 1.0, %v1134
    %v1136 = vmul.f32 %v1133, %v1135
    %v1137 = vadd.f32 %v1133, %v1136
    %vm1138 = vweird.f32 %v1132
    %vm1139 = vweird.f32 %v1133
    %vm1140 = vmor %vm1138, %vm1139
    %v1141 = vsel %vm1140, %v1133, %v1137
    %v1142 = vand.u32 2147483647, %v1132
    %vm1143 = vcmp.eq.f32.partialorder %v1142, 8.507059e+37
    %v1144 = vand.u32 %v1132, 2147483648
    %v1145 = vor.u32 1.1754944e-38, %v1144
    %v1146 = vsel %vm1143, %v1145, %v1141
    %v1147 = vmul.f32 1.0, %v1146
    %v1148 = vtanh.pop %v1127
    %v1149 = vxor.u32 %v1128, 2147483648
    %v1150 = vmul.f32 %v1149, 1.442695
    %v1151 = vpow.pop %v1150
    %v1152 = vadd.f32 %v1151, 1.0
    %v1153 = vrcp.pop %v1152
    %v1154 = vmul.f32 %v1152, %v1153
    %v1155 = vsub.f32 1.0, %v1154
    %v1156 = vmul.f32 %v1153, %v1155
    %v1157 = vadd.f32 %v1153, %v1156
    %vm1158 = vweird.f32 %v1152
    %vm1159 = vweird.f32 %v1153
    %vm1160 = vmor %vm1158, %vm1159
    %v1161 = vsel %vm1160, %v1153, %v1157
    %v1162 = vand.u32 2147483647, %v1152
    %vm1163 = vcmp.eq.f32.partialorder %v1162, 8.507059e+37
    %v1164 = vand.u32 %v1152, 2147483648
    %v1165 = vor.u32 1.1754944e-38, %v1164
    %v1166 = vsel %vm1163, %v1165, %v1161
    %v1167 = vmul.f32 1.0, %v1166
    %v1168 = vtanh.pop %v1128
    %v1170 = vrot.slane %v1043, 4
    %v1172 = vmul.f32 %v1147, %v1170
    %1174 = vrot.lane.b32.xlu0 %v1148, 32
    %v1175 = vpop.permute.xlu0 %1174
    %v1177 = vmul.f32 %v1147, %v1175
    %1179 = vrot.lane.b32.xlu0 %v1177, 32
    %v1180 = vpop.permute.xlu0 %1179
    %v1182 = vadd.f32 %v1172, %v1180
    %v1183 = vtanh.pop %v1182
    %1185 = vrot.lane.b32.xlu0 %v1183, 32
    %v1186 = vpop.permute.xlu0 %1185
    %v1188 = vmul.f32 %v1147, %v1186
    %1190 = vrot.lane.b32.xlu0 %v1061, 32
    %v1191 = vpop.permute.xlu0 %1190
    %v1193 = vmul.f32 %v1167, %v1191
    %1195 = vrot.lane.b32.xlu0 %v1168, 32
    %v1196 = vpop.permute.xlu0 %1195
    %v1198 = vmul.f32 %v1167, %v1196
    %1200 = vrot.lane.b32.xlu0 %v1198, 32
    %v1201 = vpop.permute.xlu0 %1200
    %v1203 = vadd.f32 %v1193, %v1201
    %v1204 = vtanh.pop %v1203
    %1206 = vrot.lane.b32.xlu0 %v1204, 32
    %v1207 = vpop.permute.xlu0 %1206
    %v1209 = vmul.f32 %v1167, %v1207
    %v1211 = vrot.slane %v1188, 4
    %1212 = vrot.lane.b32.xlu0 %v1211, 64
    %v1213 = vpop.permute.xlu0 %1212
    %v1215 = vsel %vm667, %v1213, %v1074
    %v1217 = vrot.slane %v1182, 4
    %1218 = vrot.lane.b32.xlu0 %v1217, 96
    %v1219 = vpop.permute.xlu0 %1218
    %1221 = vrot.lane.b32.xlu0 %v1043, 96
    %v1222 = vpop.permute.xlu0 %1221
    %v1224 = vsel %vm667, %v1219, %v1222
    %1225 = vrot.lane.b32.xlu0 %v1052, 64
    %v1226 = vpop.permute.xlu0 %1225
    %v1228 = vsel %vm656, %v1209, %v1226
    %v1229 = vsel %vm656, %v1203, %v1191
    %1231 = vrot.lane.b32.xlu0 %v1066, 64
    %v1232 = vpop.permute.xlu0 %1231
    %v1234 = vsel %vm704, %v1213, %v1232
    %1236 = vrot.lane.b32.xlu0 %v1071, 64
    %v1237 = vpop.permute.xlu0 %1236
    %v1239 = vsel %vm692, %v1209, %v1237
    %1241 = vrot.lane.b32.xlu0 %v1228, 96
    %v1242 = vpop.permute.xlu0 %1241
    %v1244 = vsel %vm51, %v1215, %v1242
    %v1246 = vsel %vm142, %v1244, 0
    %1248 = vmatpush.msra.mxu0 0.0
    %1249 = vmatpush.msra.mxu0 0.0
    %1250 = vmatpush.msra.mxu0 0.0
    %1251 = vmatpush.msra.mxu0 0.0
    %1252 = vmatpush.msra.mxu0 0.0
    %1253 = vmatpush.msra.mxu0 0.0
    %1254 = vmatpush.msra.mxu0 0.0
    %1255 = vmatpush.msra.mxu0 0.0
    %1256 = vmatpush.msra.mxu0 %v136
    %1257 = vmatpush.msra.mxu0 %v134
    %1258 = vmatpush.msra.mxu0 %v132
    %1259 = vmatpush.msra.mxu0 %v130
    %1260 = vmatpush.msra.mxu0 %v128
    %1261 = vmatpush.msra.mxu0 %v126
    %1262 = vmatpush.msra.mxu0 %v124
    %1263 = vmatpush.msra.mxu0 %v122
    %1264 = vmatmul.f32.gmra.mxu0 %v1246
    %v1265 = vpop.f32.mrf.mxu0
    %v1266 = vadd.f32 0.0, %v1265
    %1267 = vdwg.mxu0
    %1268 = vmatpush.msra.mxu0 0.0
    %1269 = vmatpush.msra.mxu0 0.0
    %1270 = vmatpush.msra.mxu0 0.0
    %1271 = vmatpush.msra.mxu0 0.0
    %1272 = vmatpush.msra.mxu0 0.0
    %1273 = vmatpush.msra.mxu0 0.0
    %1274 = vmatpush.msra.mxu0 0.0
    %1275 = vmatpush.msra.mxu0 0.0
    %1276 = vmatpush.msra.mxu0 %v137
    %1277 = vmatpush.msra.mxu0 %v135
    %1278 = vmatpush.msra.mxu0 %v133
    %1279 = vmatpush.msra.mxu0 %v131
    %1280 = vmatpush.msra.mxu0 %v129
    %1281 = vmatpush.msra.mxu0 %v127
    %1282 = vmatpush.msra.mxu0 %v125
    %1283 = vmatpush.msra.mxu0 %v123
    %1284 = vmatmul.f32.gmra.mxu0 %v1246
    %v1285 = vpop.f32.mrf.mxu0
    %v1286 = vadd.f32 0.0, %v1285
    %1287 = vdwg.mxu0
    %v1288 = vadd.f32 %v91, %v1266
    %v1290 = vrot.slane %v1286, 4
    %v1292 = vadd.f32 %v111, %v1290
    %v1293 = vxor.u32 %v1288, 2147483648
    %v1294 = vmul.f32 %v1293, 1.442695
    %v1295 = vpow.pop %v1294
    %v1296 = vadd.f32 %v1295, 1.0
    %v1297 = vrcp.pop %v1296
    %v1298 = vmul.f32 %v1296, %v1297
    %v1299 = vsub.f32 1.0, %v1298
    %v1300 = vmul.f32 %v1297, %v1299
    %v1301 = vadd.f32 %v1297, %v1300
    %vm1302 = vweird.f32 %v1296
    %vm1303 = vweird.f32 %v1297
    %vm1304 = vmor %vm1302, %vm1303
    %v1305 = vsel %vm1304, %v1297, %v1301
    %v1306 = vand.u32 2147483647, %v1296
    %vm1307 = vcmp.eq.f32.partialorder %v1306, 8.507059e+37
    %v1308 = vand.u32 %v1296, 2147483648
    %v1309 = vor.u32 1.1754944e-38, %v1308
    %v1310 = vsel %vm1307, %v1309, %v1305
    %v1311 = vmul.f32 1.0, %v1310
    %v1312 = vtanh.pop %v1288
    %v1313 = vxor.u32 %v1292, 2147483648
    %v1314 = vmul.f32 %v1313, 1.442695
    %v1315 = vpow.pop %v1314
    %v1316 = vadd.f32 %v1315, 1.0
    %v1317 = vrcp.pop %v1316
    %v1318 = vmul.f32 %v1316, %v1317
    %v1319 = vsub.f32 1.0, %v1318
    %v1320 = vmul.f32 %v1317, %v1319
    %v1321 = vadd.f32 %v1317, %v1320
    %vm1322 = vweird.f32 %v1316
    %vm1323 = vweird.f32 %v1317
    %vm1324 = vmor %vm1322, %vm1323
    %v1325 = vsel %vm1324, %v1317, %v1321
    %v1326 = vand.u32 2147483647, %v1316
    %vm1327 = vcmp.eq.f32.partialorder %v1326, 8.507059e+37
    %v1328 = vand.u32 %v1316, 2147483648
    %v1329 = vor.u32 1.1754944e-38, %v1328
    %v1330 = vsel %vm1327, %v1329, %v1325
    %v1331 = vmul.f32 1.0, %v1330
    %v1332 = vtanh.pop %v1292
    %1334 = vrot.lane.b32.xlu0 %v1224, 32
    %v1335 = vpop.permute.xlu0 %1334
    %v1337 = vmul.f32 %v1311, %v1335
    %1339 = vrot.lane.b32.xlu0 %v1312, 32
    %v1340 = vpop.permute.xlu0 %1339
    %v1342 = vmul.f32 %v1311, %v1340
    %1344 = vrot.lane.b32.xlu0 %v1342, 32
    %v1345 = vpop.permute.xlu0 %1344
    %v1347 = vadd.f32 %v1337, %v1345
    %v1348 = vtanh.pop %v1347
    %1350 = vrot.lane.b32.xlu0 %v1348, 32
    %v1351 = vpop.permute.xlu0 %1350
    %v1353 = vmul.f32 %v1311, %v1351
    %v1355 = vrot.slane %v1229, 4
    %v1357 = vmul.f32 %v1331, %v1355
    %1359 = vrot.lane.b32.xlu0 %v1332, 32
    %v1360 = vpop.permute.xlu0 %1359
    %v1362 = vmul.f32 %v1331, %v1360
    %1364 = vrot.lane.b32.xlu0 %v1362, 32
    %v1365 = vpop.permute.xlu0 %1364
    %v1367 = vadd.f32 %v1357, %v1365
    %v1368 = vtanh.pop %v1367
    %1370 = vrot.lane.b32.xlu0 %v1368, 32
    %v1371 = vpop.permute.xlu0 %1370
    %v1373 = vmul.f32 %v1331, %v1371
    %1375 = vrot.lane.b32.xlu0 %v1215, 64
    %v1376 = vpop.permute.xlu0 %1375
    %v1378 = vsel %vm486, %v1353, %v1376
    %v1379 = vsel %vm486, %v1347, %v1335
    %v1381 = vrot.slane %v1373, 4
    %1382 = vrot.lane.b32.xlu0 %v1381, 64
    %v1383 = vpop.permute.xlu0 %1382
    %1385 = vrot.lane.b32.xlu0 %v1228, 64
    %v1386 = vpop.permute.xlu0 %1385
    %v1388 = vsel %vm466, %v1383, %v1386
    %v1390 = vrot.slane %v1367, 4
    %1391 = vrot.lane.b32.xlu0 %v1390, 96
    %v1392 = vpop.permute.xlu0 %1391
    %1394 = vrot.lane.b32.xlu0 %v1229, 96
    %v1395 = vpop.permute.xlu0 %1394
    %v1397 = vsel %vm466, %v1392, %v1395
    %1399 = vrot.lane.b32.xlu0 %v1234, 64
    %v1400 = vpop.permute.xlu0 %1399
    %v1402 = vsel %vm510, %v1353, %v1400
    %1404 = vrot.lane.b32.xlu0 %v1239, 64
    %v1405 = vpop.permute.xlu0 %1404
    %v1407 = vsel %vm498, %v1383, %v1405
    %1409 = vrot.lane.b32.xlu0 %v1378, 64
    %v1410 = vpop.permute.xlu0 %1409
    %1413 = vrot.lane.b32.xlu0 %v1388, 32
    %v1414 = vpop.permute.xlu0 %1413
    %v1416 = vsel %vm51, %v1410, %v1414
    %v1418 = vsel %vm142, %v1416, 0
    %1420 = vmatpush.msra.mxu0 0.0
    %1421 = vmatpush.msra.mxu0 0.0
    %1422 = vmatpush.msra.mxu0 0.0
    %1423 = vmatpush.msra.mxu0 0.0
    %1424 = vmatpush.msra.mxu0 0.0
    %1425 = vmatpush.msra.mxu0 0.0
    %1426 = vmatpush.msra.mxu0 0.0
    %1427 = vmatpush.msra.mxu0 0.0
    %1428 = vmatpush.msra.mxu0 %v136
    %1429 = vmatpush.msra.mxu0 %v134
    %1430 = vmatpush.msra.mxu0 %v132
    %1431 = vmatpush.msra.mxu0 %v130
    %1432 = vmatpush.msra.mxu0 %v128
    %1433 = vmatpush.msra.mxu0 %v126
    %1434 = vmatpush.msra.mxu0 %v124
    %1435 = vmatpush.msra.mxu0 %v122
    %1436 = vmatmul.f32.gmra.mxu0 %v1418
    %v1437 = vpop.f32.mrf.mxu0
    %v1438 = vadd.f32 0.0, %v1437
    %1439 = vdwg.mxu0
    %1440 = vmatpush.msra.mxu0 0.0
    %1441 = vmatpush.msra.mxu0 0.0
    %1442 = vmatpush.msra.mxu0 0.0
    %1443 = vmatpush.msra.mxu0 0.0
    %1444 = vmatpush.msra.mxu0 0.0
    %1445 = vmatpush.msra.mxu0 0.0
    %1446 = vmatpush.msra.mxu0 0.0
    %1447 = vmatpush.msra.mxu0 0.0
    %1448 = vmatpush.msra.mxu0 %v137
    %1449 = vmatpush.msra.mxu0 %v135
    %1450 = vmatpush.msra.mxu0 %v133
    %1451 = vmatpush.msra.mxu0 %v131
    %1452 = vmatpush.msra.mxu0 %v129
    %1453 = vmatpush.msra.mxu0 %v127
    %1454 = vmatpush.msra.mxu0 %v125
    %1455 = vmatpush.msra.mxu0 %v123
    %1456 = vmatmul.f32.gmra.mxu0 %v1418
    %v1457 = vpop.f32.mrf.mxu0
    %v1458 = vadd.f32 0.0, %v1457
    %1459 = vdwg.mxu0
    %v1461 = vrot.slane %v1438, 4
    %v1463 = vadd.f32 %v91, %v1461
    %v1464 = vadd.f32 %v111, %v1458
    %v1465 = vxor.u32 %v1463, 2147483648
    %v1466 = vmul.f32 %v1465, 1.442695
    %v1467 = vpow.pop %v1466
    %v1468 = vadd.f32 %v1467, 1.0
    %v1469 = vrcp.pop %v1468
    %v1470 = vmul.f32 %v1468, %v1469
    %v1471 = vsub.f32 1.0, %v1470
    %v1472 = vmul.f32 %v1469, %v1471
    %v1473 = vadd.f32 %v1469, %v1472
    %vm1474 = vweird.f32 %v1468
    %vm1475 = vweird.f32 %v1469
    %vm1476 = vmor %vm1474, %vm1475
    %v1477 = vsel %vm1476, %v1469, %v1473
    %v1478 = vand.u32 2147483647, %v1468
    %vm1479 = vcmp.eq.f32.partialorder %v1478, 8.507059e+37
    %v1480 = vand.u32 %v1468, 2147483648
    %v1481 = vor.u32 1.1754944e-38, %v1480
    %v1482 = vsel %vm1479, %v1481, %v1477
    %v1483 = vmul.f32 1.0, %v1482
    %v1484 = vtanh.pop %v1463
    %v1485 = vxor.u32 %v1464, 2147483648
    %v1486 = vmul.f32 %v1485, 1.442695
    %v1487 = vpow.pop %v1486
    %v1488 = vadd.f32 %v1487, 1.0
    %v1489 = vrcp.pop %v1488
    %v1490 = vmul.f32 %v1488, %v1489
    %v1491 = vsub.f32 1.0, %v1490
    %v1492 = vmul.f32 %v1489, %v1491
    %v1493 = vadd.f32 %v1489, %v1492
    %vm1494 = vweird.f32 %v1488
    %vm1495 = vweird.f32 %v1489
    %vm1496 = vmor %vm1494, %vm1495
    %v1497 = vsel %vm1496, %v1489, %v1493
    %v1498 = vand.u32 2147483647, %v1488
    %vm1499 = vcmp.eq.f32.partialorder %v1498, 8.507059e+37
    %v1500 = vand.u32 %v1488, 2147483648
    %v1501 = vor.u32 1.1754944e-38, %v1500
    %v1502 = vsel %vm1499, %v1501, %v1497
    %v1503 = vmul.f32 1.0, %v1502
    %v1504 = vtanh.pop %v1464
    %v1506 = vrot.slane %v1379, 4
    %v1508 = vmul.f32 %v1483, %v1506
    %1510 = vrot.lane.b32.xlu0 %v1484, 32
    %v1511 = vpop.permute.xlu0 %1510
    %v1513 = vmul.f32 %v1483, %v1511
    %1515 = vrot.lane.b32.xlu0 %v1513, 32
    %v1516 = vpop.permute.xlu0 %1515
    %v1518 = vadd.f32 %v1508, %v1516
    %v1519 = vtanh.pop %v1518
    %1521 = vrot.lane.b32.xlu0 %v1519, 32
    %v1522 = vpop.permute.xlu0 %1521
    %v1524 = vmul.f32 %v1483, %v1522
    %1526 = vrot.lane.b32.xlu0 %v1397, 32
    %v1527 = vpop.permute.xlu0 %1526
    %v1529 = vmul.f32 %v1503, %v1527
    %1531 = vrot.lane.b32.xlu0 %v1504, 32
    %v1532 = vpop.permute.xlu0 %1531
    %v1534 = vmul.f32 %v1503, %v1532
    %1536 = vrot.lane.b32.xlu0 %v1534, 32
    %v1537 = vpop.permute.xlu0 %1536
    %v1539 = vadd.f32 %v1529, %v1537
    %v1540 = vtanh.pop %v1539
    %1542 = vrot.lane.b32.xlu0 %v1540, 32
    %v1543 = vpop.permute.xlu0 %1542
    %v1545 = vmul.f32 %v1503, %v1543
    %v1547 = vrot.slane %v1524, 4
    %1548 = vrot.lane.b32.xlu0 %v1547, 64
    %v1549 = vpop.permute.xlu0 %1548
    %1552 = vrot.lane.b32.xlu0 %v1402, 64
    %v1553 = vpop.permute.xlu0 %1552
    %v1555 = vsel %vm320, %v1549, %v1553
    %1557 = vrot.lane.b32.xlu0 %v1407, 64
    %v1558 = vpop.permute.xlu0 %1557
    %v1560 = vsel %vm312, %v1545, %v1558
    %1562 = vrot.lane.b32.xlu0 %v1560, 96
    %v1563 = vpop.permute.xlu0 %1562
    %v1566 = vrot.slane %v1555, 2
    %1567 = vrot.lane.b32.xlu0 %v1566, 64
    %v1568 = vpop.permute.xlu0 %1567
    %v1570 = vrot.slane %v1560, 2
    %1571 = vrot.lane.b32.xlu0 %v1570, 32
    %v1572 = vpop.permute.xlu0 %1571
    %v1574 = vsel %vm51, %v1555, %v1563
    %v1575 = vsel %vm142, %v1574, %v1568
    %vm1576 = vcmask 785408
    %v1577 = vsel %vm1576, %v1575, %v1572
    %v1578 = vld [vmem:[%s7] sm:$0xff]
    %v1579 = vld [vmem:[%s7 + $0x8] sm:$0xff]
    %v1580 = vld [vmem:[%s7 + $0x10] sm:$0xff]
    %v1581 = vld [vmem:[%s7 + $0x18] sm:$0xff]
    %v1582 = vld [vmem:[%s7 + $0x20] sm:$0xff]
    %v1583 = vld [vmem:[%s7 + $0x28] sm:$0xff]
    %v1584 = vld [vmem:[%s7 + $0x30] sm:$0xff]
    %v1585 = vld [vmem:[%s7 + $0x38] sm:$0xff]
    %v1586 = vld [vmem:[%s7 + $0x40] sm:$0xff]
    %v1587 = vld [vmem:[%s7 + $0x48] sm:$0xff]
    %v1588 = vld [vmem:[%s7 + $0x50] sm:$0xff]
    %v1589 = vld [vmem:[%s7 + $0x58] sm:$0xff]
    %v1590 = vld [vmem:[%s7 + $0x60] sm:$0xff]
    %v1591 = vld [vmem:[%s7 + $0x68] sm:$0xff]
    %v1592 = vld [vmem:[%s7 + $0x70] sm:$0xff]
    %v1593 = vld [vmem:[%s7 + $0x78] sm:$0xff]
    %1594 = vmatpush.msra.mxu0 %v1593
    %1595 = vmatpush.msra.mxu0 %v1592
    %1596 = vmatpush.msra.mxu0 %v1591
    %1597 = vmatpush.msra.mxu0 %v1590
    %1598 = vmatpush.msra.mxu0 %v1589
    %1599 = vmatpush.msra.mxu0 %v1588
    %1600 = vmatpush.msra.mxu0 %v1587
    %1601 = vmatpush.msra.mxu0 %v1586
    %1602 = vmatpush.msra.mxu0 %v1585
    %1603 = vmatpush.msra.mxu0 %v1584
    %1604 = vmatpush.msra.mxu0 %v1583
    %1605 = vmatpush.msra.mxu0 %v1582
    %1606 = vmatpush.msra.mxu0 %v1581
    %1607 = vmatpush.msra.mxu0 %v1580
    %1608 = vmatpush.msra.mxu0 %v1579
    %1609 = vmatpush.msra.mxu0 %v1578
    %1610 = vmatmul.f32.gmra.mxu0 %v1577
    %v1611 = vpop.f32.mrf.mxu0
    %v1612 = vadd.f32 0.0, %v1611
    %1613 = vdwg.mxu0
    %v1614 = vmax.f32 %v1612, 0.0
    %v1615 = vld [vmem:[%s8] sm:$0xff]
    %v1616 = vld [vmem:[%s8 + $0x8] sm:$0xff]
    %vm1617 = vcmask 130048
    %v1619 = vsel %vm1617, %v1614, 0
    %1621 = vmatpush.msra.mxu0 0.0
    %1622 = vmatpush.msra.mxu0 0.0
    %1623 = vmatpush.msra.mxu0 0.0
    %1624 = vmatpush.msra.mxu0 0.0
    %1625 = vmatpush.msra.mxu0 0.0
    %1626 = vmatpush.msra.mxu0 0.0
    %1627 = vmatpush.msra.mxu0 0.0
    %1628 = vmatpush.msra.mxu0 0.0
    %1629 = vmatpush.msra.mxu0 0.0
    %1630 = vmatpush.msra.mxu0 0.0
    %1631 = vmatpush.msra.mxu0 0.0
    %1632 = vmatpush.msra.mxu0 0.0
    %1633 = vmatpush.msra.mxu0 0.0
    %1634 = vmatpush.msra.mxu0 0.0
    %1635 = vmatpush.msra.mxu0 %v1616
    %1636 = vmatpush.msra.mxu0 %v1615
    %1637 = vmatmul.f32.gmra.mxu0 %v1619
    %v1638 = vpop.f32.mrf.mxu0
    %v1639 = vadd.f32 0.0, %v1638
    %1640 = vdwg.mxu0
    %v1641 = vmax.f32 %v1639, 0.0
    %v1642 = vld [vmem:[%s9] sm:$0xff]
    %vm1643 = vcmask 64512
    %v1645 = vsel %vm1643, %v1641, 0
    %1647 = vmatpush.msra.mxu0 0.0
    %1648 = vmatpush.msra.mxu0 0.0
    %1649 = vmatpush.msra.mxu0 0.0
    %1650 = vmatpush.msra.mxu0 0.0
    %1651 = vmatpush.msra.mxu0 0.0
    %1652 = vmatpush.msra.mxu0 0.0
    %1653 = vmatpush.msra.mxu0 0.0
    %1654 = vmatpush.msra.mxu0 0.0
    %1655 = vmatpush.msra.mxu0 0.0
    %1656 = vmatpush.msra.mxu0 0.0
    %1657 = vmatpush.msra.mxu0 0.0
    %1658 = vmatpush.msra.mxu0 0.0
    %1659 = vmatpush.msra.mxu0 0.0
    %1660 = vmatpush.msra.mxu0 0.0
    %1661 = vmatpush.msra.mxu0 0.0
    %1662 = vmatpush.msra.mxu0 %v1642
    %1663 = vmatmul.f32.gmra.mxu0 %v1645
    %v1664 = vpop.f32.mrf.mxu0
    %v1665 = vadd.f32 0.0, %v1664
    %1666 = vdwg.mxu0
    %vm1667 = vcmask 9216
    %1668 = vst.msk [vmem:[#allocation2] sm:$0x3] %vm1667, %v1665
    %v1669 = vsel %vm1667, %v1665, -inf
    %1670 = vmax.xlane.f32.xlu0 %v1669
    %v1671 = vpop.xlane.xlu0 %1670
    %v1672 = vsub.f32 %v1665, %v1671
    %v1673 = vmul.f32 %v1672, 1.442695
    %v1674 = vpow.pop %v1673
    %v1675 = vsel %vm1667, %v1674, 0.0
    %1676 = vadd.xlane.f32.xlu0 %v1675
    %v1677 = vpop.xlane.xlu0 %1676
    %v1678 = vrcp.pop %v1677
    %v1679 = vmul.f32 %v1677, %v1678
    %v1680 = vsub.f32 1.0, %v1679
    %v1681 = vmul.f32 %v1678, %v1680
    %v1682 = vadd.f32 %v1678, %v1681
    %vm1683 = vweird.f32 %v1677
    %vm1684 = vweird.f32 %v1678
    %vm1685 = vmor %vm1683, %vm1684
    %v1686 = vsel %vm1685, %v1678, %v1682
    %v1687 = vand.u32 2147483647, %v1677
    %vm1688 = vcmp.eq.f32.partialorder %v1687, 8.507059e+37
    %v1689 = vand.u32 %v1677, 2147483648
    %v1690 = vor.u32 1.1754944e-38, %v1689
    %v1691 = vsel %vm1688, %v1690, %v1686
    %v1692 = vmul.f32 %v1674, %v1691
    %1693 = vst.msk [vmem:[#allocation4] sm:$0x3] %vm1667, %v1692
    // Predicated region
    $region42: #{model_a2m1_forward.1} parent=1 // pred_check
      _
    $region43: #{model_a2m1_forward.1} parent=1 // pred_check_branch
      %1695 = sbr.rel (0) target = $region45
    $region44: #{model_a2m1_forward.1} parent=1 // pred_region
      %1697 = vsyncadd [#allocation3], 0
      %s1699 = sshll.u32 [#allocation2], 4
      %s1700 = int_to_ptr.vmem [resolvable:$true] %s1699
      %s1701 = sshll.u32 %s10, 4
      %s1702 = int_to_ptr.hbm [resolvable:$true] %s1701
      %1704 = dma.vmem_to_hbm [thread:$0]  %s1700, 32, %s1702, [#allocation3]
    $region45: #{model_a2m1_forward.1} parent=1 // pred_fallthru
      _
    // Predicated region
    $region46: #{model_a2m1_forward.1} parent=1 // pred_check
      _
    $region47: #{model_a2m1_forward.1} parent=1 // pred_check_branch
      %1706 = sbr.rel (0) target = $region49
    $region48: #{model_a2m1_forward.1} parent=1 // pred_region
      %1708 = vsyncadd [#allocation5], 0
      %s1710 = sshll.u32 [#allocation4], 4
      %s1711 = int_to_ptr.vmem [resolvable:$true] %s1710
      %s1712 = sshll.u32 %s11, 4
      %s1713 = int_to_ptr.hbm [resolvable:$true] %s1712
      %1715 = dma.vmem_to_hbm [thread:$0]  %s1711, 32, %s1713, [#allocation5]
    $region49: #{model_a2m1_forward.1} parent=1 // pred_fallthru
      _
    // Predicated region
    $region50: #{model_a2m1_forward.1} parent=1 // pred_check
      _
    $region51: #{model_a2m1_forward.1} parent=1 // pred_check_branch
      %1717 = sbr.rel (0) target = $region53
    $region52: #{model_a2m1_forward.1} parent=1 // pred_region
      %1719 = dma.done [#allocation3], 32
    $region53: #{model_a2m1_forward.1} parent=1 // pred_fallthru
      _
    // Predicated region
    $region54: #{model_a2m1_forward.1} parent=1 // pred_check
      _
    $region55: #{model_a2m1_forward.1} parent=1 // pred_check_branch
      %1721 = sbr.rel (0) target = $region57
    $region56: #{model_a2m1_forward.1} parent=1 // pred_region
      %1723 = dma.done [#allocation5], 32
    $region57: #{model_a2m1_forward.1} parent=1 // pred_fallthru
      _
    %1724 = vsyncpa [#allocation3], 1
    %1725 = vsyncpa [#allocation5], 1

</llo_original>
